<compile_context>
chip_gen: v5e
topology: v5e:2x2
jax: 0.10.0
libtpu: 0.0.40
codegen_flags: <defaults>
</compile_context>

<pallas_src>
import functools

import jax
import jax.numpy as jnp
from jax.experimental import pallas as pl
from jax.experimental.pallas import tpu as pltpu

KSIZES = (3, 5)                       # module default kernel_sizes=[3, 5]
MAXPAD = max(k // 2 for k in KSIZES)  # 2
NSHIFT = 2 * MAXPAD + 1               # 5 distinct temporal shifts
NBRANCH = len(KSIZES)


def _spectrogram_kernel(x_ref, w_ref, bb_ref, wf_ref, bf_ref, o_ref,
                        shift_ref, *, ts_sub):
    """One (batch, spatial-tile) block per grid step.

    x_ref     : (1, C, T, TS)        VMEM input block (unpadded)
    w_ref     : (O*C*(3+5),)         SMEM, BN-folded branch conv weights (flat)
    bb_ref    : (2*O,)               SMEM, BN-folded branch conv biases
    wf_ref    : (O*2*O,)             SMEM, 1x1x1 fuse weights (flat, row-major)
    bf_ref    : (O,)                 SMEM, fuse bias
    o_ref     : (1, O, T, TS)        VMEM output block
    shift_ref : (C, NSHIFT-1, T, TS) VMEM scratch of shifted copies (shift != 0)
    """
    C = x_ref.shape[1]
    O = o_ref.shape[1]
    T = o_ref.shape[2]
    TS = o_ref.shape[3]
    OB = NBRANCH * O                  # number of branch channels (2*O)
    K0, K1 = KSIZES
    W2_OFF = O * C * K0               # offset of the k=5 weights in w_ref
    n_sub = TS // ts_sub

    # ---- phase 0: build each genuinely shifted copy exactly once -----------
    # shift_ref[c, m, t, :] = x[c, t + s, :]  (zero outside [0, T)),  s != 0,
    # with slot m = (s + MAXPAD) for s < 0 and (s + MAXPAD - 1) for s > 0.
    zeros_pad = {r: jnp.zeros((r, TS), jnp.float32)
                 for r in sorted({abs(j - MAXPAD) for j in range(NSHIFT)
                                  if j != MAXPAD and abs(j - MAXPAD) < T})}
    zeros_full = jnp.zeros((T, TS), jnp.float32) if T <= MAXPAD else None
    for c in range(C):
        for j in range(NSHIFT):
            s = j - MAXPAD
            if s == 0:
                continue
            m = j if j < MAXPAD else j - 1
            n = T - abs(s)
            if n <= 0:
                shift_ref[c, m, :, :] = zeros_full
            elif s > 0:
                shift_ref[c, m, 0:n, :] = x_ref[0, c, s:T, :]
                shift_ref[c, m, n:T, :] = zeros_pad[s]
            else:  # s < 0
                shift_ref[c, m, -s:T, :] = x_ref[0, c, 0:n, :]
                shift_ref[c, m, 0:-s, :] = zeros_pad[-s]

    # ---- phase 1: per sub-block, register-resident conv -> ReLU -> fuse ----
    def sub_body(sub):
        if isinstance(sub, int):
            off = sub * ts_sub
        else:
            off = pl.multiple_of(sub * ts_sub, ts_sub)
        col = pl.ds(off, ts_sub)

        # Branch-channel accumulators, live in vregs across (c, shift).
        acc = [None] * OB
        for c in range(C):
            for j in range(NSHIFT):
                s = j - MAXPAD
                if s == 0:
                    sl = x_ref[0, c, :, col]
                else:
                    m = j if j < MAXPAD else j - 1
                    sl = shift_ref[c, m, :, col]
                # branch 1 (k=5): tap d == j, uses every shift
                for o in range(O):
                    ch = O + o
                    w = w_ref[W2_OFF + (o * C + c) * K1 + j]
                    t = w * sl
                    acc[ch] = t if acc[ch] is None else acc[ch] + t
                # branch 0 (k=3): tap d == j-1, shifts j in {1, 2, 3}
                if 1 <= j <= K0:
                    for o in range(O):
                        w = w_ref[(o * C + c) * K0 + (j - 1)]
                        t = w * sl
                        acc[o] = t if acc[o] is None else acc[o] + t

        # BN-folded bias + ReLU + 1x1x1 fuse into register accumulators.
        out = [None] * O
        for ch in range(OB):
            act = jnp.maximum(acc[ch] + bb_ref[ch], 0.0)
            for oo in range(O):
                t = wf_ref[oo * OB + ch] * act
                out[oo] = t if out[oo] is None else out[oo] + t
        # Single store per (output channel, sub-block).
        for oo in range(O):
            o_ref[0, oo, :, col] = out[oo] + bf_ref[oo]

    if n_sub == 1:
        sub_body(0)
    else:
        pl.loop(0, n_sub)(sub_body)
    # Dropout3d == identity in eval mode.


def learnable_spectrogram(x, params, *, ts_cap=8192, sub_lanes=512):
    """x: (B, C, T, H, W) float32  ->  (B, O, T, H, W) float32 (eval mode)."""
    B, C, T, H, W = x.shape
    S = H * W
    O = params["b1"].shape[0]
    eps = 1e-5

    # Fold eval-mode BatchNorm into the branch conv weights / biases.
    scale = params["gamma"] / jnp.sqrt(params["var"] + eps)
    shift = params["beta"] - params["mean"] * scale
    w1 = params["w1"] * scale[:O, None, None]
    w2 = params["w2"] * scale[O:, None, None]
    b1 = params["b1"] * scale[:O] + shift[:O]
    b2 = params["b2"] * scale[O:] + shift[O:]

    # Flatten tiny parameters to 1-D for compact SMEM residency.
    wpack = jnp.concatenate([w1.reshape(-1), w2.reshape(-1)])
    bb = jnp.concatenate([b1, b2])
    wff = params["wf"].reshape(-1)
    bf = params["bf"]

    # ---- spatial (lane) tiling ---------------------------------------------
    LANE = 128
    # Per-lane f32 bytes of the working set: shift scratch + double-buffered
    # input/output blocks.  Budget ~12 MiB fits every chip (v7x: 32 MiB scoped
    # default / 64 MiB physical).
    per_lane = 4 * T * (C * (NSHIFT - 1) + 2 * C + 2 * O)
    budget = 12 * 1024 * 1024
    cap = max(LANE, min(ts_cap, (budget // per_lane) // LANE * LANE))

    s128 = pl.cdiv(S, LANE) * LANE
    n_s = pl.cdiv(s128, cap)
    if B * n_s < 2 and s128 >= 2 * LANE:
        n_s = 2                        # keep both v7x TensorCores busy
    TS = pl.cdiv(pl.cdiv(s128, n_s), LANE) * LANE
    if TS > sub_lanes:
        TS = pl.cdiv(TS, sub_lanes) * sub_lanes   # sub-blocks divide TS evenly
    ts_sub = min(sub_lanes, TS)
    S_pad = n_s * TS

    xr = x.reshape(B, C, T, S)
    if S_pad != S:
        xr = jnp.pad(xr, ((0, 0), (0, 0), (0, 0), (0, S_pad - S)))

    smem = pl.BlockSpec(memory_space=pltpu.MemorySpace.SMEM)
    kernel = functools.partial(_spectrogram_kernel, ts_sub=ts_sub)
    out = pl.pallas_call(
        kernel,
        out_shape=jax.ShapeDtypeStruct((B, O, T, S_pad), jnp.float32),
        grid=(B, n_s),
        in_specs=[
            pl.BlockSpec((1, C, T, TS), lambda b, s: (b, 0, 0, s)),
            smem, smem, smem, smem,
        ],
        out_specs=pl.BlockSpec((1, O, T, TS), lambda b, s: (b, 0, 0, s)),
        scratch_shapes=[pltpu.VMEM((C, NSHIFT - 1, T, TS), jnp.float32)],
        compiler_params=pltpu.CompilerParams(
            dimension_semantics=("parallel", "parallel"),
            vmem_limit_bytes=32 * 1024 * 1024),
    )(xr, wpack, bb, wff, bf)

    if S_pad != S:
        out = out[..., :S]
    return out.reshape(B, O, T, H, W)


def init_params(key, in_channels=3, out_channels=3):
    ks = jax.random.split(key, 10)
    O, C = out_channels, in_channels
    p = {}
    p["w1"] = 0.2 * jax.random.normal(ks[0], (O, C, KSIZES[0]), jnp.float32)
    p["b1"] = 0.1 * jax.random.normal(ks[1], (O,), jnp.float32)
    p["w2"] = 0.2 * jax.random.normal(ks[2], (O, C, KSIZES[1]), jnp.float32)
    p["b2"] = 0.1 * jax.random.normal(ks[3], (O,), jnp.float32)
    p["gamma"] = 1.0 + 0.1 * jax.random.normal(ks[4], (2 * O,), jnp.float32)
    p["beta"] = 0.1 * jax.random.normal(ks[5], (2 * O,), jnp.float32)
    p["mean"] = 0.1 * jax.random.normal(ks[6], (2 * O,), jnp.float32)
    p["var"] = 1.0 + 0.1 * jnp.abs(
        jax.random.normal(ks[7], (2 * O,), jnp.float32))
    p["wf"] = 0.2 * jax.random.normal(ks[8], (O, 2 * O), jnp.float32)
    p["bf"] = 0.1 * jax.random.normal(ks[9], (O,), jnp.float32)
    return p


def ref_forward(x, p):
    """Pure-JAX reference (NCDHW lax convolutions, eval-mode BN, no dropout)."""
    dn = ("NCDHW", "OIDHW", "NCDHW")
    hp = jax.lax.Precision.HIGHEST

    def conv_t(x, w, b):
        k = w.shape[2]
        w5 = w[:, :, :, None, None]
        y = jax.lax.conv_general_dilated(
            x, w5, window_strides=(1, 1, 1),
            padding=((k // 2, k // 2), (0, 0), (0, 0)),
            dimension_numbers=dn, precision=hp)
        return y + b[None, :, None, None, None]

    y1 = conv_t(x, p["w1"], p["b1"])
    y2 = conv_t(x, p["w2"], p["b2"])
    ycat = jnp.concatenate([y1, y2], axis=1)
    scale = p["gamma"] / jnp.sqrt(p["var"] + 1e-5)
    shift = p["beta"] - p["mean"] * scale
    ybn = ycat * scale[None, :, None, None, None] \
        + shift[None, :, None, None, None]
    yr = jnp.maximum(ybn, 0.0)
    wf5 = p["wf"][:, :, None, None, None]
    z = jax.lax.conv_general_dilated(
        yr, wf5, window_strides=(1, 1, 1),
        padding=((0, 0), (0, 0), (0, 0)),
        dimension_numbers=dn, precision=hp)
    return z + p["bf"][None, :, None, None, None]


if __name__ == "__main__":
    key = jax.random.PRNGKey(0)
    pkey, xkey = jax.random.split(key)

    B, C, T, H, W = 2, 3, 8, 16, 16
    params = init_params(pkey, in_channels=C, out_channels=3)
    x = jax.random.normal(xkey, (B, C, T, H, W), jnp.float32)

    out = learnable_spectrogram(x, params)
    out = jax.block_until_ready(out)

    ref = ref_forward(x, params)
    assert out.shape == (B, 3, T, H, W), out.shape
    assert jnp.allclose(out, ref, atol=1e-3, rtol=1e-3), \
        float(jnp.max(jnp.abs(out - ref)))

    print("KERNEL_OK")
</pallas_src>

<mosaic_0001>
module attributes {stable_mosaic.version = 11 : i64} {
  func.func @_spectrogram_kernel(%arg0: i32, %arg1: i32, %arg2: memref<1x3x8x256xf32, #tpu.memory_space<vmem>>, %arg3: memref<72xf32, #tpu.memory_space<smem>>, %arg4: memref<6xf32, #tpu.memory_space<smem>>, %arg5: memref<18xf32, #tpu.memory_space<smem>>, %arg6: memref<3xf32, #tpu.memory_space<smem>>, %arg7: memref<1x3x8x256xf32, #tpu.memory_space<vmem>>, %arg8: memref<3x4x8x256xf32, #tpu.memory_space<vmem>>) attributes {dimension_semantics = [#tpu.dimension_semantics<parallel>, #tpu.dimension_semantics<parallel>], iteration_bounds = array<i64: 2, 1>, scalar_prefetch = 0 : i64, scratch_operands = 1 : i64, tpu.core_type = #tpu.core_type<tc>, window_params = [{transform_indices = @transform_0, window_bounds = array<i64: 1, 3, 8, 256>}, {transform_indices = @transform_1, window_bounds = array<i64: 72>}, {transform_indices = @transform_2, window_bounds = array<i64: 6>}, {transform_indices = @transform_3, window_bounds = array<i64: 18>}, {transform_indices = @transform_4, window_bounds = array<i64: 3>}, {transform_indices = @transform_5, window_bounds = array<i64: 1, 3, 8, 256>}]} {
    %cst = arith.constant 0.000000e+00 : f32
    %0 = vector.broadcast %cst : f32 to vector<1x256xf32>
    %cst_0 = arith.constant 0.000000e+00 : f32
    %1 = vector.broadcast %cst_0 : f32 to vector<2x256xf32>
    %c0 = arith.constant 0 : index
    %c0_1 = arith.constant 0 : index
    %c0_2 = arith.constant 0 : index
    %c0_3 = arith.constant 0 : index
    %2 = vector.load %arg2[%c0, %c0_1, %c0_2, %c0_3] : memref<1x3x8x256xf32, #tpu.memory_space<vmem>>, vector<1x1x6x256xf32>
    %3 = vector.shape_cast %2 : vector<1x1x6x256xf32> to vector<6x256xf32>
    %c0_4 = arith.constant 0 : index
    %c0_5 = arith.constant 0 : index
    %c2 = arith.constant 2 : index
    %c0_6 = arith.constant 0 : index
    %4 = vector.load %arg8[%c0_4, %c0_5, %c2, %c0_6] : memref<3x4x8x256xf32, #tpu.memory_space<vmem>>, vector<1x1x6x256xf32>
    %5 = vector.shape_cast %4 : vector<1x1x6x256xf32> to vector<6x256xf32>
    %6 = vector.shape_cast %3 : vector<6x256xf32> to vector<1x1x6x256xf32>
    tpu.vector_store %arg8[%c0_4, %c0_5, %c2, %c0_6], %6 {strides = array<i32>} : memref<3x4x8x256xf32, #tpu.memory_space<vmem>>, vector<1x1x6x256xf32>,
    %c0_7 = arith.constant 0 : index
    %c0_8 = arith.constant 0 : index
    %c0_9 = arith.constant 0 : index
    %c0_10 = arith.constant 0 : index
    %7 = vector.load %arg8[%c0_7, %c0_8, %c0_9, %c0_10] : memref<3x4x8x256xf32, #tpu.memory_space<vmem>>, vector<1x1x2x256xf32>
    %8 = vector.shape_cast %7 : vector<1x1x2x256xf32> to vector<2x256xf32>
    %9 = vector.shape_cast %1 : vector<2x256xf32> to vector<1x1x2x256xf32>
    tpu.vector_store %arg8[%c0_7, %c0_8, %c0_9, %c0_10], %9 {strides = array<i32>} : memref<3x4x8x256xf32, #tpu.memory_space<vmem>>, vector<1x1x2x256xf32>,
    %c0_11 = arith.constant 0 : index
    %c0_12 = arith.constant 0 : index
    %c0_13 = arith.constant 0 : index
    %c0_14 = arith.constant 0 : index
    %10 = vector.load %arg2[%c0_11, %c0_12, %c0_13, %c0_14] : memref<1x3x8x256xf32, #tpu.memory_space<vmem>>, vector<1x1x7x256xf32>
    %11 = vector.shape_cast %10 : vector<1x1x7x256xf32> to vector<7x256xf32>
    %c0_15 = arith.constant 0 : index
    %c1 = arith.constant 1 : index
    %c1_16 = arith.constant 1 : index
    %c0_17 = arith.constant 0 : index
    %12 = vector.load %arg8[%c0_15, %c1, %c1_16, %c0_17] : memref<3x4x8x256xf32, #tpu.memory_space<vmem>>, vector<1x1x7x256xf32>
    %13 = vector.shape_cast %12 : vector<1x1x7x256xf32> to vector<7x256xf32>
    %14 = vector.shape_cast %11 : vector<7x256xf32> to vector<1x1x7x256xf32>
    tpu.vector_store %arg8[%c0_15, %c1, %c1_16, %c0_17], %14 {strides = array<i32>} : memref<3x4x8x256xf32, #tpu.memory_space<vmem>>, vector<1x1x7x256xf32>,
    %c0_18 = arith.constant 0 : index
    %c1_19 = arith.constant 1 : index
    %c0_20 = arith.constant 0 : index
    %c0_21 = arith.constant 0 : index
    %15 = vector.load %arg8[%c0_18, %c1_19, %c0_20, %c0_21] : memref<3x4x8x256xf32, #tpu.memory_space<vmem>>, vector<1x1x1x256xf32>
    %16 = vector.shape_cast %15 : vector<1x1x1x256xf32> to vector<1x256xf32>
    %17 = vector.shape_cast %0 : vector<1x256xf32> to vector<1x1x1x256xf32>
    tpu.vector_store %arg8[%c0_18, %c1_19, %c0_20, %c0_21], %17 {strides = array<i32>} : memref<3x4x8x256xf32, #tpu.memory_space<vmem>>, vector<1x1x1x256xf32>,
    %c0_22 = arith.constant 0 : index
    %c0_23 = arith.constant 0 : index
    %c1_24 = arith.constant 1 : index
    %c0_25 = arith.constant 0 : index
    %18 = vector.load %arg2[%c0_22, %c0_23, %c1_24, %c0_25] : memref<1x3x8x256xf32, #tpu.memory_space<vmem>>, vector<1x1x7x256xf32>
    %19 = vector.shape_cast %18 : vector<1x1x7x256xf32> to vector<7x256xf32>
    %c0_26 = arith.constant 0 : index
    %c2_27 = arith.constant 2 : index
    %c0_28 = arith.constant 0 : index
    %c0_29 = arith.constant 0 : index
    %20 = vector.load %arg8[%c0_26, %c2_27, %c0_28, %c0_29] : memref<3x4x8x256xf32, #tpu.memory_space<vmem>>, vector<1x1x7x256xf32>
    %21 = vector.shape_cast %20 : vector<1x1x7x256xf32> to vector<7x256xf32>
    %22 = vector.shape_cast %19 : vector<7x256xf32> to vector<1x1x7x256xf32>
    tpu.vector_store %arg8[%c0_26, %c2_27, %c0_28, %c0_29], %22 {strides = array<i32>} : memref<3x4x8x256xf32, #tpu.memory_space<vmem>>, vector<1x1x7x256xf32>,
    %c0_30 = arith.constant 0 : index
    %c2_31 = arith.constant 2 : index
    %c7 = arith.constant 7 : index
    %c0_32 = arith.constant 0 : index
    %23 = vector.load %arg8[%c0_30, %c2_31, %c7, %c0_32] : memref<3x4x8x256xf32, #tpu.memory_space<vmem>>, vector<1x1x1x256xf32>
    %24 = vector.shape_cast %23 : vector<1x1x1x256xf32> to vector<1x256xf32>
    %25 = vector.shape_cast %0 : vector<1x256xf32> to vector<1x1x1x256xf32>
    tpu.vector_store %arg8[%c0_30, %c2_31, %c7, %c0_32], %25 {strides = array<i32>} : memref<3x4x8x256xf32, #tpu.memory_space<vmem>>, vector<1x1x1x256xf32>,
    %c0_33 = arith.constant 0 : index
    %c0_34 = arith.constant 0 : index
    %c2_35 = arith.constant 2 : index
    %c0_36 = arith.constant 0 : index
    %26 = vector.load %arg2[%c0_33, %c0_34, %c2_35, %c0_36] : memref<1x3x8x256xf32, #tpu.memory_space<vmem>>, vector<1x1x6x256xf32>
    %27 = vector.shape_cast %26 : vector<1x1x6x256xf32> to vector<6x256xf32>
    %c0_37 = arith.constant 0 : index
    %c3 = arith.constant 3 : index
    %c0_38 = arith.constant 0 : index
    %c0_39 = arith.constant 0 : index
    %28 = vector.load %arg8[%c0_37, %c3, %c0_38, %c0_39] : memref<3x4x8x256xf32, #tpu.memory_space<vmem>>, vector<1x1x6x256xf32>
    %29 = vector.shape_cast %28 : vector<1x1x6x256xf32> to vector<6x256xf32>
    %30 = vector.shape_cast %27 : vector<6x256xf32> to vector<1x1x6x256xf32>
    tpu.vector_store %arg8[%c0_37, %c3, %c0_38, %c0_39], %30 {strides = array<i32>} : memref<3x4x8x256xf32, #tpu.memory_space<vmem>>, vector<1x1x6x256xf32>,
    %c0_40 = arith.constant 0 : index
    %c3_41 = arith.constant 3 : index
    %c6 = arith.constant 6 : index
    %c0_42 = arith.constant 0 : index
    %31 = vector.load %arg8[%c0_40, %c3_41, %c6, %c0_42] : memref<3x4x8x256xf32, #tpu.memory_space<vmem>>, vector<1x1x2x256xf32>
    %32 = vector.shape_cast %31 : vector<1x1x2x256xf32> to vector<2x256xf32>
    %33 = vector.shape_cast %1 : vector<2x256xf32> to vector<1x1x2x256xf32>
    tpu.vector_store %arg8[%c0_40, %c3_41, %c6, %c0_42], %33 {strides = array<i32>} : memref<3x4x8x256xf32, #tpu.memory_space<vmem>>, vector<1x1x2x256xf32>,
    %c0_43 = arith.constant 0 : index
    %c1_44 = arith.constant 1 : index
    %c0_45 = arith.constant 0 : index
    %c0_46 = arith.constant 0 : index
    %34 = vector.load %arg2[%c0_43, %c1_44, %c0_45, %c0_46] : memref<1x3x8x256xf32, #tpu.memory_space<vmem>>, vector<1x1x6x256xf32>
    %35 = vector.shape_cast %34 : vector<1x1x6x256xf32> to vector<6x256xf32>
    %c1_47 = arith.constant 1 : index
    %c0_48 = arith.constant 0 : index
    %c2_49 = arith.constant 2 : index
    %c0_50 = arith.constant 0 : index
    %36 = vector.load %arg8[%c1_47, %c0_48, %c2_49, %c0_50] : memref<3x4x8x256xf32, #tpu.memory_space<vmem>>, vector<1x1x6x256xf32>
    %37 = vector.shape_cast %36 : vector<1x1x6x256xf32> to vector<6x256xf32>
    %38 = vector.shape_cast %35 : vector<6x256xf32> to vector<1x1x6x256xf32>
    tpu.vector_store %arg8[%c1_47, %c0_48, %c2_49, %c0_50], %38 {strides = array<i32>} : memref<3x4x8x256xf32, #tpu.memory_space<vmem>>, vector<1x1x6x256xf32>,
    %c1_51 = arith.constant 1 : index
    %c0_52 = arith.constant 0 : index
    %c0_53 = arith.constant 0 : index
    %c0_54 = arith.constant 0 : index
    %39 = vector.load %arg8[%c1_51, %c0_52, %c0_53, %c0_54] : memref<3x4x8x256xf32, #tpu.memory_space<vmem>>, vector<1x1x2x256xf32>
    %40 = vector.shape_cast %39 : vector<1x1x2x256xf32> to vector<2x256xf32>
    %41 = vector.shape_cast %1 : vector<2x256xf32> to vector<1x1x2x256xf32>
    tpu.vector_store %arg8[%c1_51, %c0_52, %c0_53, %c0_54], %41 {strides = array<i32>} : memref<3x4x8x256xf32, #tpu.memory_space<vmem>>, vector<1x1x2x256xf32>,
    %c0_55 = arith.constant 0 : index
    %c1_56 = arith.constant 1 : index
    %c0_57 = arith.constant 0 : index
    %c0_58 = arith.constant 0 : index
    %42 = vector.load %arg2[%c0_55, %c1_56, %c0_57, %c0_58] : memref<1x3x8x256xf32, #tpu.memory_space<vmem>>, vector<1x1x7x256xf32>
    %43 = vector.shape_cast %42 : vector<1x1x7x256xf32> to vector<7x256xf32>
    %c1_59 = arith.constant 1 : index
    %c1_60 = arith.constant 1 : index
    %c1_61 = arith.constant 1 : index
    %c0_62 = arith.constant 0 : index
    %44 = vector.load %arg8[%c1_59, %c1_60, %c1_61, %c0_62] : memref<3x4x8x256xf32, #tpu.memory_space<vmem>>, vector<1x1x7x256xf32>
    %45 = vector.shape_cast %44 : vector<1x1x7x256xf32> to vector<7x256xf32>
    %46 = vector.shape_cast %43 : vector<7x256xf32> to vector<1x1x7x256xf32>
    tpu.vector_store %arg8[%c1_59, %c1_60, %c1_61, %c0_62], %46 {strides = array<i32>} : memref<3x4x8x256xf32, #tpu.memory_space<vmem>>, vector<1x1x7x256xf32>,
    %c1_63 = arith.constant 1 : index
    %c1_64 = arith.constant 1 : index
    %c0_65 = arith.constant 0 : index
    %c0_66 = arith.constant 0 : index
    %47 = vector.load %arg8[%c1_63, %c1_64, %c0_65, %c0_66] : memref<3x4x8x256xf32, #tpu.memory_space<vmem>>, vector<1x1x1x256xf32>
    %48 = vector.shape_cast %47 : vector<1x1x1x256xf32> to vector<1x256xf32>
    %49 = vector.shape_cast %0 : vector<1x256xf32> to vector<1x1x1x256xf32>
    tpu.vector_store %arg8[%c1_63, %c1_64, %c0_65, %c0_66], %49 {strides = array<i32>} : memref<3x4x8x256xf32, #tpu.memory_space<vmem>>, vector<1x1x1x256xf32>,
    %c0_67 = arith.constant 0 : index
    %c1_68 = arith.constant 1 : index
    %c1_69 = arith.constant 1 : index
    %c0_70 = arith.constant 0 : index
    %50 = vector.load %arg2[%c0_67, %c1_68, %c1_69, %c0_70] : memref<1x3x8x256xf32, #tpu.memory_space<vmem>>, vector<1x1x7x256xf32>
    %51 = vector.shape_cast %50 : vector<1x1x7x256xf32> to vector<7x256xf32>
    %c1_71 = arith.constant 1 : index
    %c2_72 = arith.constant 2 : index
    %c0_73 = arith.constant 0 : index
    %c0_74 = arith.constant 0 : index
    %52 = vector.load %arg8[%c1_71, %c2_72, %c0_73, %c0_74] : memref<3x4x8x256xf32, #tpu.memory_space<vmem>>, vector<1x1x7x256xf32>
    %53 = vector.shape_cast %52 : vector<1x1x7x256xf32> to vector<7x256xf32>
    %54 = vector.shape_cast %51 : vector<7x256xf32> to vector<1x1x7x256xf32>
    tpu.vector_store %arg8[%c1_71, %c2_72, %c0_73, %c0_74], %54 {strides = array<i32>} : memref<3x4x8x256xf32, #tpu.memory_space<vmem>>, vector<1x1x7x256xf32>,
    %c1_75 = arith.constant 1 : index
    %c2_76 = arith.constant 2 : index
    %c7_77 = arith.constant 7 : index
    %c0_78 = arith.constant 0 : index
    %55 = vector.load %arg8[%c1_75, %c2_76, %c7_77, %c0_78] : memref<3x4x8x256xf32, #tpu.memory_space<vmem>>, vector<1x1x1x256xf32>
    %56 = vector.shape_cast %55 : vector<1x1x1x256xf32> to vector<1x256xf32>
    %57 = vector.shape_cast %0 : vector<1x256xf32> to vector<1x1x1x256xf32>
    tpu.vector_store %arg8[%c1_75, %c2_76, %c7_77, %c0_78], %57 {strides = array<i32>} : memref<3x4x8x256xf32, #tpu.memory_space<vmem>>, vector<1x1x1x256xf32>,
    %c0_79 = arith.constant 0 : index
    %c1_80 = arith.constant 1 : index
    %c2_81 = arith.constant 2 : index
    %c0_82 = arith.constant 0 : index
    %58 = vector.load %arg2[%c0_79, %c1_80, %c2_81, %c0_82] : memref<1x3x8x256xf32, #tpu.memory_space<vmem>>, vector<1x1x6x256xf32>
    %59 = vector.shape_cast %58 : vector<1x1x6x256xf32> to vector<6x256xf32>
    %c1_83 = arith.constant 1 : index
    %c3_84 = arith.constant 3 : index
    %c0_85 = arith.constant 0 : index
    %c0_86 = arith.constant 0 : index
    %60 = vector.load %arg8[%c1_83, %c3_84, %c0_85, %c0_86] : memref<3x4x8x256xf32, #tpu.memory_space<vmem>>, vector<1x1x6x256xf32>
    %61 = vector.shape_cast %60 : vector<1x1x6x256xf32> to vector<6x256xf32>
    %62 = vector.shape_cast %59 : vector<6x256xf32> to vector<1x1x6x256xf32>
    tpu.vector_store %arg8[%c1_83, %c3_84, %c0_85, %c0_86], %62 {strides = array<i32>} : memref<3x4x8x256xf32, #tpu.memory_space<vmem>>, vector<1x1x6x256xf32>,
    %c1_87 = arith.constant 1 : index
    %c3_88 = arith.constant 3 : index
    %c6_89 = arith.constant 6 : index
    %c0_90 = arith.constant 0 : index
    %63 = vector.load %arg8[%c1_87, %c3_88, %c6_89, %c0_90] : memref<3x4x8x256xf32, #tpu.memory_space<vmem>>, vector<1x1x2x256xf32>
    %64 = vector.shape_cast %63 : vector<1x1x2x256xf32> to vector<2x256xf32>
    %65 = vector.shape_cast %1 : vector<2x256xf32> to vector<1x1x2x256xf32>
    tpu.vector_store %arg8[%c1_87, %c3_88, %c6_89, %c0_90], %65 {strides = array<i32>} : memref<3x4x8x256xf32, #tpu.memory_space<vmem>>, vector<1x1x2x256xf32>,
    %c0_91 = arith.constant 0 : index
    %c2_92 = arith.constant 2 : index
    %c0_93 = arith.constant 0 : index
    %c0_94 = arith.constant 0 : index
    %66 = vector.load %arg2[%c0_91, %c2_92, %c0_93, %c0_94] : memref<1x3x8x256xf32, #tpu.memory_space<vmem>>, vector<1x1x6x256xf32>
    %67 = vector.shape_cast %66 : vector<1x1x6x256xf32> to vector<6x256xf32>
    %c2_95 = arith.constant 2 : index
    %c0_96 = arith.constant 0 : index
    %c2_97 = arith.constant 2 : index
    %c0_98 = arith.constant 0 : index
    %68 = vector.load %arg8[%c2_95, %c0_96, %c2_97, %c0_98] : memref<3x4x8x256xf32, #tpu.memory_space<vmem>>, vector<1x1x6x256xf32>
    %69 = vector.shape_cast %68 : vector<1x1x6x256xf32> to vector<6x256xf32>
    %70 = vector.shape_cast %67 : vector<6x256xf32> to vector<1x1x6x256xf32>
    tpu.vector_store %arg8[%c2_95, %c0_96, %c2_97, %c0_98], %70 {strides = array<i32>} : memref<3x4x8x256xf32, #tpu.memory_space<vmem>>, vector<1x1x6x256xf32>,
    %c2_99 = arith.constant 2 : index
    %c0_100 = arith.constant 0 : index
    %c0_101 = arith.constant 0 : index
    %c0_102 = arith.constant 0 : index
    %71 = vector.load %arg8[%c2_99, %c0_100, %c0_101, %c0_102] : memref<3x4x8x256xf32, #tpu.memory_space<vmem>>, vector<1x1x2x256xf32>
    %72 = vector.shape_cast %71 : vector<1x1x2x256xf32> to vector<2x256xf32>
    %73 = vector.shape_cast %1 : vector<2x256xf32> to vector<1x1x2x256xf32>
    tpu.vector_store %arg8[%c2_99, %c0_100, %c0_101, %c0_102], %73 {strides = array<i32>} : memref<3x4x8x256xf32, #tpu.memory_space<vmem>>, vector<1x1x2x256xf32>,
    %c0_103 = arith.constant 0 : index
    %c2_104 = arith.constant 2 : index
    %c0_105 = arith.constant 0 : index
    %c0_106 = arith.constant 0 : index
    %74 = vector.load %arg2[%c0_103, %c2_104, %c0_105, %c0_106] : memref<1x3x8x256xf32, #tpu.memory_space<vmem>>, vector<1x1x7x256xf32>
    %75 = vector.shape_cast %74 : vector<1x1x7x256xf32> to vector<7x256xf32>
    %c2_107 = arith.constant 2 : index
    %c1_108 = arith.constant 1 : index
    %c1_109 = arith.constant 1 : index
    %c0_110 = arith.constant 0 : index
    %76 = vector.load %arg8[%c2_107, %c1_108, %c1_109, %c0_110] : memref<3x4x8x256xf32, #tpu.memory_space<vmem>>, vector<1x1x7x256xf32>
    %77 = vector.shape_cast %76 : vector<1x1x7x256xf32> to vector<7x256xf32>
    %78 = vector.shape_cast %75 : vector<7x256xf32> to vector<1x1x7x256xf32>
    tpu.vector_store %arg8[%c2_107, %c1_108, %c1_109, %c0_110], %78 {strides = array<i32>} : memref<3x4x8x256xf32, #tpu.memory_space<vmem>>, vector<1x1x7x256xf32>,
    %c2_111 = arith.constant 2 : index
    %c1_112 = arith.constant 1 : index
    %c0_113 = arith.constant 0 : index
    %c0_114 = arith.constant 0 : index
    %79 = vector.load %arg8[%c2_111, %c1_112, %c0_113, %c0_114] : memref<3x4x8x256xf32, #tpu.memory_space<vmem>>, vector<1x1x1x256xf32>
    %80 = vector.shape_cast %79 : vector<1x1x1x256xf32> to vector<1x256xf32>
    %81 = vector.shape_cast %0 : vector<1x256xf32> to vector<1x1x1x256xf32>
    tpu.vector_store %arg8[%c2_111, %c1_112, %c0_113, %c0_114], %81 {strides = array<i32>} : memref<3x4x8x256xf32, #tpu.memory_space<vmem>>, vector<1x1x1x256xf32>,
    %c0_115 = arith.constant 0 : index
    %c2_116 = arith.constant 2 : index
    %c1_117 = arith.constant 1 : index
    %c0_118 = arith.constant 0 : index
    %82 = vector.load %arg2[%c0_115, %c2_116, %c1_117, %c0_118] : memref<1x3x8x256xf32, #tpu.memory_space<vmem>>, vector<1x1x7x256xf32>
    %83 = vector.shape_cast %82 : vector<1x1x7x256xf32> to vector<7x256xf32>
    %c2_119 = arith.constant 2 : index
    %c2_120 = arith.constant 2 : index
    %c0_121 = arith.constant 0 : index
    %c0_122 = arith.constant 0 : index
    %84 = vector.load %arg8[%c2_119, %c2_120, %c0_121, %c0_122] : memref<3x4x8x256xf32, #tpu.memory_space<vmem>>, vector<1x1x7x256xf32>
    %85 = vector.shape_cast %84 : vector<1x1x7x256xf32> to vector<7x256xf32>
    %86 = vector.shape_cast %83 : vector<7x256xf32> to vector<1x1x7x256xf32>
    tpu.vector_store %arg8[%c2_119, %c2_120, %c0_121, %c0_122], %86 {strides = array<i32>} : memref<3x4x8x256xf32, #tpu.memory_space<vmem>>, vector<1x1x7x256xf32>,
    %c2_123 = arith.constant 2 : index
    %c2_124 = arith.constant 2 : index
    %c7_125 = arith.constant 7 : index
    %c0_126 = arith.constant 0 : index
    %87 = vector.load %arg8[%c2_123, %c2_124, %c7_125, %c0_126] : memref<3x4x8x256xf32, #tpu.memory_space<vmem>>, vector<1x1x1x256xf32>
    %88 = vector.shape_cast %87 : vector<1x1x1x256xf32> to vector<1x256xf32>
    %89 = vector.shape_cast %0 : vector<1x256xf32> to vector<1x1x1x256xf32>
    tpu.vector_store %arg8[%c2_123, %c2_124, %c7_125, %c0_126], %89 {strides = array<i32>} : memref<3x4x8x256xf32, #tpu.memory_space<vmem>>, vector<1x1x1x256xf32>,
    %c0_127 = arith.constant 0 : index
    %c2_128 = arith.constant 2 : index
    %c2_129 = arith.constant 2 : index
    %c0_130 = arith.constant 0 : index
    %90 = vector.load %arg2[%c0_127, %c2_128, %c2_129, %c0_130] : memref<1x3x8x256xf32, #tpu.memory_space<vmem>>, vector<1x1x6x256xf32>
    %91 = vector.shape_cast %90 : vector<1x1x6x256xf32> to vector<6x256xf32>
    %c2_131 = arith.constant 2 : index
    %c3_132 = arith.constant 3 : index
    %c0_133 = arith.constant 0 : index
    %c0_134 = arith.constant 0 : index
    %92 = vector.load %arg8[%c2_131, %c3_132, %c0_133, %c0_134] : memref<3x4x8x256xf32, #tpu.memory_space<vmem>>, vector<1x1x6x256xf32>
    %93 = vector.shape_cast %92 : vector<1x1x6x256xf32> to vector<6x256xf32>
    %94 = vector.shape_cast %91 : vector<6x256xf32> to vector<1x1x6x256xf32>
    tpu.vector_store %arg8[%c2_131, %c3_132, %c0_133, %c0_134], %94 {strides = array<i32>} : memref<3x4x8x256xf32, #tpu.memory_space<vmem>>, vector<1x1x6x256xf32>,
    %c2_135 = arith.constant 2 : index
    %c3_136 = arith.constant 3 : index
    %c6_137 = arith.constant 6 : index
    %c0_138 = arith.constant 0 : index
    %95 = vector.load %arg8[%c2_135, %c3_136, %c6_137, %c0_138] : memref<3x4x8x256xf32, #tpu.memory_space<vmem>>, vector<1x1x2x256xf32>
    %96 = vector.shape_cast %95 : vector<1x1x2x256xf32> to vector<2x256xf32>
    %97 = vector.shape_cast %1 : vector<2x256xf32> to vector<1x1x2x256xf32>
    tpu.vector_store %arg8[%c2_135, %c3_136, %c6_137, %c0_138], %97 {strides = array<i32>} : memref<3x4x8x256xf32, #tpu.memory_space<vmem>>, vector<1x1x2x256xf32>,
    %c0_139 = arith.constant 0 : index
    %c0_140 = arith.constant 0 : index
    %c0_141 = arith.constant 0 : index
    %c0_142 = arith.constant 0 : index
    %98 = vector.load %arg8[%c0_139, %c0_140, %c0_141, %c0_142] : memref<3x4x8x256xf32, #tpu.memory_space<vmem>>, vector<1x1x8x256xf32>
    %99 = vector.shape_cast %98 : vector<1x1x8x256xf32> to vector<8x256xf32>
    %c27 = arith.constant 27 : index
    %100 = memref.load %arg3[%c27] : memref<72xf32, #tpu.memory_space<smem>>
    %101 = vector.broadcast %100 : f32 to vector<8x256xf32>
    %102 = arith.mulf %101, %99 : vector<8x256xf32>
    %c42 = arith.constant 42 : index
    %103 = memref.load %arg3[%c42] : memref<72xf32, #tpu.memory_space<smem>>
    %104 = vector.broadcast %103 : f32 to vector<8x256xf32>
    %105 = arith.mulf %104, %99 : vector<8x256xf32>
    %c57 = arith.constant 57 : index
    %106 = memref.load %arg3[%c57] : memref<72xf32, #tpu.memory_space<smem>>
    %107 = vector.broadcast %106 : f32 to vector<8x256xf32>
    %108 = arith.mulf %107, %99 : vector<8x256xf32>
    %c0_143 = arith.constant 0 : index
    %c1_144 = arith.constant 1 : index
    %c0_145 = arith.constant 0 : index
    %c0_146 = arith.constant 0 : index
    %109 = vector.load %arg8[%c0_143, %c1_144, %c0_145, %c0_146] : memref<3x4x8x256xf32, #tpu.memory_space<vmem>>, vector<1x1x8x256xf32>
    %110 = vector.shape_cast %109 : vector<1x1x8x256xf32> to vector<8x256xf32>
    %c28 = arith.constant 28 : index
    %111 = memref.load %arg3[%c28] : memref<72xf32, #tpu.memory_space<smem>>
    %112 = vector.broadcast %111 : f32 to vector<8x256xf32>
    %113 = arith.mulf %112, %110 : vector<8x256xf32>
    %114 = arith.addf %102, %113 : vector<8x256xf32>
    %c43 = arith.constant 43 : index
    %115 = memref.load %arg3[%c43] : memref<72xf32, #tpu.memory_space<smem>>
    %116 = vector.broadcast %115 : f32 to vector<8x256xf32>
    %117 = arith.mulf %116, %110 : vector<8x256xf32>
    %118 = arith.addf %105, %117 : vector<8x256xf32>
    %c58 = arith.constant 58 : index
    %119 = memref.load %arg3[%c58] : memref<72xf32, #tpu.memory_space<smem>>
    %120 = vector.broadcast %119 : f32 to vector<8x256xf32>
    %121 = arith.mulf %120, %110 : vector<8x256xf32>
    %122 = arith.addf %108, %121 : vector<8x256xf32>
    %c0_147 = arith.constant 0 : index
    %123 = memref.load %arg3[%c0_147] : memref<72xf32, #tpu.memory_space<smem>>
    %124 = vector.broadcast %123 : f32 to vector<8x256xf32>
    %125 = arith.mulf %124, %110 : vector<8x256xf32>
    %c9 = arith.constant 9 : index
    %126 = memref.load %arg3[%c9] : memref<72xf32, #tpu.memory_space<smem>>
    %127 = vector.broadcast %126 : f32 to vector<8x256xf32>
    %128 = arith.mulf %127, %110 : vector<8x256xf32>
    %c18 = arith.constant 18 : index
    %129 = memref.load %arg3[%c18] : memref<72xf32, #tpu.memory_space<smem>>
    %130 = vector.broadcast %129 : f32 to vector<8x256xf32>
    %131 = arith.mulf %130, %110 : vector<8x256xf32>
    %c0_148 = arith.constant 0 : index
    %c0_149 = arith.constant 0 : index
    %c0_150 = arith.constant 0 : index
    %c0_151 = arith.constant 0 : index
    %132 = vector.load %arg2[%c0_148, %c0_149, %c0_150, %c0_151] : memref<1x3x8x256xf32, #tpu.memory_space<vmem>>, vector<1x1x8x256xf32>
    %133 = vector.shape_cast %132 : vector<1x1x8x256xf32> to vector<8x256xf32>
    %c29 = arith.constant 29 : index
    %134 = memref.load %arg3[%c29] : memref<72xf32, #tpu.memory_space<smem>>
    %135 = vector.broadcast %134 : f32 to vector<8x256xf32>
    %136 = arith.mulf %135, %133 : vector<8x256xf32>
    %137 = arith.addf %114, %136 : vector<8x256xf32>
    %c44 = arith.constant 44 : index
    %138 = memref.load %arg3[%c44] : memref<72xf32, #tpu.memory_space<smem>>
    %139 = vector.broadcast %138 : f32 to vector<8x256xf32>
    %140 = arith.mulf %139, %133 : vector<8x256xf32>
    %141 = arith.addf %118, %140 : vector<8x256xf32>
    %c59 = arith.constant 59 : index
    %142 = memref.load %arg3[%c59] : memref<72xf32, #tpu.memory_space<smem>>
    %143 = vector.broadcast %142 : f32 to vector<8x256xf32>
    %144 = arith.mulf %143, %133 : vector<8x256xf32>
    %145 = arith.addf %122, %144 : vector<8x256xf32>
    %c1_152 = arith.constant 1 : index
    %146 = memref.load %arg3[%c1_152] : memref<72xf32, #tpu.memory_space<smem>>
    %147 = vector.broadcast %146 : f32 to vector<8x256xf32>
    %148 = arith.mulf %147, %133 : vector<8x256xf32>
    %149 = arith.addf %125, %148 : vector<8x256xf32>
    %c10 = arith.constant 10 : index
    %150 = memref.load %arg3[%c10] : memref<72xf32, #tpu.memory_space<smem>>
    %151 = vector.broadcast %150 : f32 to vector<8x256xf32>
    %152 = arith.mulf %151, %133 : vector<8x256xf32>
    %153 = arith.addf %128, %152 : vector<8x256xf32>
    %c19 = arith.constant 19 : index
    %154 = memref.load %arg3[%c19] : memref<72xf32, #tpu.memory_space<smem>>
    %155 = vector.broadcast %154 : f32 to vector<8x256xf32>
    %156 = arith.mulf %155, %133 : vector<8x256xf32>
    %157 = arith.addf %131, %156 : vector<8x256xf32>
    %c0_153 = arith.constant 0 : index
    %c2_154 = arith.constant 2 : index
    %c0_155 = arith.constant 0 : index
    %c0_156 = arith.constant 0 : index
    %158 = vector.load %arg8[%c0_153, %c2_154, %c0_155, %c0_156] : memref<3x4x8x256xf32, #tpu.memory_space<vmem>>, vector<1x1x8x256xf32>
    %159 = vector.shape_cast %158 : vector<1x1x8x256xf32> to vector<8x256xf32>
    %c30 = arith.constant 30 : index
    %160 = memref.load %arg3[%c30] : memref<72xf32, #tpu.memory_space<smem>>
    %161 = vector.broadcast %160 : f32 to vector<8x256xf32>
    %162 = arith.mulf %161, %159 : vector<8x256xf32>
    %163 = arith.addf %137, %162 : vector<8x256xf32>
    %c45 = arith.constant 45 : index
    %164 = memref.load %arg3[%c45] : memref<72xf32, #tpu.memory_space<smem>>
    %165 = vector.broadcast %164 : f32 to vector<8x256xf32>
    %166 = arith.mulf %165, %159 : vector<8x256xf32>
    %167 = arith.addf %141, %166 : vector<8x256xf32>
    %c60 = arith.constant 60 : index
    %168 = memref.load %arg3[%c60] : memref<72xf32, #tpu.memory_space<smem>>
    %169 = vector.broadcast %168 : f32 to vector<8x256xf32>
    %170 = arith.mulf %169, %159 : vector<8x256xf32>
    %171 = arith.addf %145, %170 : vector<8x256xf32>
    %c2_157 = arith.constant 2 : index
    %172 = memref.load %arg3[%c2_157] : memref<72xf32, #tpu.memory_space<smem>>
    %173 = vector.broadcast %172 : f32 to vector<8x256xf32>
    %174 = arith.mulf %173, %159 : vector<8x256xf32>
    %175 = arith.addf %149, %174 : vector<8x256xf32>
    %c11 = arith.constant 11 : index
    %176 = memref.load %arg3[%c11] : memref<72xf32, #tpu.memory_space<smem>>
    %177 = vector.broadcast %176 : f32 to vector<8x256xf32>
    %178 = arith.mulf %177, %159 : vector<8x256xf32>
    %179 = arith.addf %153, %178 : vector<8x256xf32>
    %c20 = arith.constant 20 : index
    %180 = memref.load %arg3[%c20] : memref<72xf32, #tpu.memory_space<smem>>
    %181 = vector.broadcast %180 : f32 to vector<8x256xf32>
    %182 = arith.mulf %181, %159 : vector<8x256xf32>
    %183 = arith.addf %157, %182 : vector<8x256xf32>
    %c0_158 = arith.constant 0 : index
    %c3_159 = arith.constant 3 : index
    %c0_160 = arith.constant 0 : index
    %c0_161 = arith.constant 0 : index
    %184 = vector.load %arg8[%c0_158, %c3_159, %c0_160, %c0_161] : memref<3x4x8x256xf32, #tpu.memory_space<vmem>>, vector<1x1x8x256xf32>
    %185 = vector.shape_cast %184 : vector<1x1x8x256xf32> to vector<8x256xf32>
    %c31 = arith.constant 31 : index
    %186 = memref.load %arg3[%c31] : memref<72xf32, #tpu.memory_space<smem>>
    %187 = vector.broadcast %186 : f32 to vector<8x256xf32>
    %188 = arith.mulf %187, %185 : vector<8x256xf32>
    %189 = arith.addf %163, %188 : vector<8x256xf32>
    %c46 = arith.constant 46 : index
    %190 = memref.load %arg3[%c46] : memref<72xf32, #tpu.memory_space<smem>>
    %191 = vector.broadcast %190 : f32 to vector<8x256xf32>
    %192 = arith.mulf %191, %185 : vector<8x256xf32>
    %193 = arith.addf %167, %192 : vector<8x256xf32>
    %c61 = arith.constant 61 : index
    %194 = memref.load %arg3[%c61] : memref<72xf32, #tpu.memory_space<smem>>
    %195 = vector.broadcast %194 : f32 to vector<8x256xf32>
    %196 = arith.mulf %195, %185 : vector<8x256xf32>
    %197 = arith.addf %171, %196 : vector<8x256xf32>
    %c1_162 = arith.constant 1 : index
    %c0_163 = arith.constant 0 : index
    %c0_164 = arith.constant 0 : index
    %c0_165 = arith.constant 0 : index
    %198 = vector.load %arg8[%c1_162, %c0_163, %c0_164, %c0_165] : memref<3x4x8x256xf32, #tpu.memory_space<vmem>>, vector<1x1x8x256xf32>
    %199 = vector.shape_cast %198 : vector<1x1x8x256xf32> to vector<8x256xf32>
    %c32 = arith.constant 32 : index
    %200 = memref.load %arg3[%c32] : memref<72xf32, #tpu.memory_space<smem>>
    %201 = vector.broadcast %200 : f32 to vector<8x256xf32>
    %202 = arith.mulf %201, %199 : vector<8x256xf32>
    %203 = arith.addf %189, %202 : vector<8x256xf32>
    %c47 = arith.constant 47 : index
    %204 = memref.load %arg3[%c47] : memref<72xf32, #tpu.memory_space<smem>>
    %205 = vector.broadcast %204 : f32 to vector<8x256xf32>
    %206 = arith.mulf %205, %199 : vector<8x256xf32>
    %207 = arith.addf %193, %206 : vector<8x256xf32>
    %c62 = arith.constant 62 : index
    %208 = memref.load %arg3[%c62] : memref<72xf32, #tpu.memory_space<smem>>
    %209 = vector.broadcast %208 : f32 to vector<8x256xf32>
    %210 = arith.mulf %209, %199 : vector<8x256xf32>
    %211 = arith.addf %197, %210 : vector<8x256xf32>
    %c1_166 = arith.constant 1 : index
    %c1_167 = arith.constant 1 : index
    %c0_168 = arith.constant 0 : index
    %c0_169 = arith.constant 0 : index
    %212 = vector.load %arg8[%c1_166, %c1_167, %c0_168, %c0_169] : memref<3x4x8x256xf32, #tpu.memory_space<vmem>>, vector<1x1x8x256xf32>
    %213 = vector.shape_cast %212 : vector<1x1x8x256xf32> to vector<8x256xf32>
    %c33 = arith.constant 33 : index
    %214 = memref.load %arg3[%c33] : memref<72xf32, #tpu.memory_space<smem>>
    %215 = vector.broadcast %214 : f32 to vector<8x256xf32>
    %216 = arith.mulf %215, %213 : vector<8x256xf32>
    %217 = arith.addf %203, %216 : vector<8x256xf32>
    %c48 = arith.constant 48 : index
    %218 = memref.load %arg3[%c48] : memref<72xf32, #tpu.memory_space<smem>>
    %219 = vector.broadcast %218 : f32 to vector<8x256xf32>
    %220 = arith.mulf %219, %213 : vector<8x256xf32>
    %221 = arith.addf %207, %220 : vector<8x256xf32>
    %c63 = arith.constant 63 : index
    %222 = memref.load %arg3[%c63] : memref<72xf32, #tpu.memory_space<smem>>
    %223 = vector.broadcast %222 : f32 to vector<8x256xf32>
    %224 = arith.mulf %223, %213 : vector<8x256xf32>
    %225 = arith.addf %211, %224 : vector<8x256xf32>
    %c3_170 = arith.constant 3 : index
    %226 = memref.load %arg3[%c3_170] : memref<72xf32, #tpu.memory_space<smem>>
    %227 = vector.broadcast %226 : f32 to vector<8x256xf32>
    %228 = arith.mulf %227, %213 : vector<8x256xf32>
    %229 = arith.addf %175, %228 : vector<8x256xf32>
    %c12 = arith.constant 12 : index
    %230 = memref.load %arg3[%c12] : memref<72xf32, #tpu.memory_space<smem>>
    %231 = vector.broadcast %230 : f32 to vector<8x256xf32>
    %232 = arith.mulf %231, %213 : vector<8x256xf32>
    %233 = arith.addf %179, %232 : vector<8x256xf32>
    %c21 = arith.constant 21 : index
    %234 = memref.load %arg3[%c21] : memref<72xf32, #tpu.memory_space<smem>>
    %235 = vector.broadcast %234 : f32 to vector<8x256xf32>
    %236 = arith.mulf %235, %213 : vector<8x256xf32>
    %237 = arith.addf %183, %236 : vector<8x256xf32>
    %c0_171 = arith.constant 0 : index
    %c1_172 = arith.constant 1 : index
    %c0_173 = arith.constant 0 : index
    %c0_174 = arith.constant 0 : index
    %238 = vector.load %arg2[%c0_171, %c1_172, %c0_173, %c0_174] : memref<1x3x8x256xf32, #tpu.memory_space<vmem>>, vector<1x1x8x256xf32>
    %239 = vector.shape_cast %238 : vector<1x1x8x256xf32> to vector<8x256xf32>
    %c34 = arith.constant 34 : index
    %240 = memref.load %arg3[%c34] : memref<72xf32, #tpu.memory_space<smem>>
    %241 = vector.broadcast %240 : f32 to vector<8x256xf32>
    %242 = arith.mulf %241, %239 : vector<8x256xf32>
    %243 = arith.addf %217, %242 : vector<8x256xf32>
    %c49 = arith.constant 49 : index
    %244 = memref.load %arg3[%c49] : memref<72xf32, #tpu.memory_space<smem>>
    %245 = vector.broadcast %244 : f32 to vector<8x256xf32>
    %246 = arith.mulf %245, %239 : vector<8x256xf32>
    %247 = arith.addf %221, %246 : vector<8x256xf32>
    %c64 = arith.constant 64 : index
    %248 = memref.load %arg3[%c64] : memref<72xf32, #tpu.memory_space<smem>>
    %249 = vector.broadcast %248 : f32 to vector<8x256xf32>
    %250 = arith.mulf %249, %239 : vector<8x256xf32>
    %251 = arith.addf %225, %250 : vector<8x256xf32>
    %c4 = arith.constant 4 : index
    %252 = memref.load %arg3[%c4] : memref<72xf32, #tpu.memory_space<smem>>
    %253 = vector.broadcast %252 : f32 to vector<8x256xf32>
    %254 = arith.mulf %253, %239 : vector<8x256xf32>
    %255 = arith.addf %229, %254 : vector<8x256xf32>
    %c13 = arith.constant 13 : index
    %256 = memref.load %arg3[%c13] : memref<72xf32, #tpu.memory_space<smem>>
    %257 = vector.broadcast %256 : f32 to vector<8x256xf32>
    %258 = arith.mulf %257, %239 : vector<8x256xf32>
    %259 = arith.addf %233, %258 : vector<8x256xf32>
    %c22 = arith.constant 22 : index
    %260 = memref.load %arg3[%c22] : memref<72xf32, #tpu.memory_space<smem>>
    %261 = vector.broadcast %260 : f32 to vector<8x256xf32>
    %262 = arith.mulf %261, %239 : vector<8x256xf32>
    %263 = arith.addf %237, %262 : vector<8x256xf32>
    %c1_175 = arith.constant 1 : index
    %c2_176 = arith.constant 2 : index
    %c0_177 = arith.constant 0 : index
    %c0_178 = arith.constant 0 : index
    %264 = vector.load %arg8[%c1_175, %c2_176, %c0_177, %c0_178] : memref<3x4x8x256xf32, #tpu.memory_space<vmem>>, vector<1x1x8x256xf32>
    %265 = vector.shape_cast %264 : vector<1x1x8x256xf32> to vector<8x256xf32>
    %c35 = arith.constant 35 : index
    %266 = memref.load %arg3[%c35] : memref<72xf32, #tpu.memory_space<smem>>
    %267 = vector.broadcast %266 : f32 to vector<8x256xf32>
    %268 = arith.mulf %267, %265 : vector<8x256xf32>
    %269 = arith.addf %243, %268 : vector<8x256xf32>
    %c50 = arith.constant 50 : index
    %270 = memref.load %arg3[%c50] : memref<72xf32, #tpu.memory_space<smem>>
    %271 = vector.broadcast %270 : f32 to vector<8x256xf32>
    %272 = arith.mulf %271, %265 : vector<8x256xf32>
    %273 = arith.addf %247, %272 : vector<8x256xf32>
    %c65 = arith.constant 65 : index
    %274 = memref.load %arg3[%c65] : memref<72xf32, #tpu.memory_space<smem>>
    %275 = vector.broadcast %274 : f32 to vector<8x256xf32>
    %276 = arith.mulf %275, %265 : vector<8x256xf32>
    %277 = arith.addf %251, %276 : vector<8x256xf32>
    %c5 = arith.constant 5 : index
    %278 = memref.load %arg3[%c5] : memref<72xf32, #tpu.memory_space<smem>>
    %279 = vector.broadcast %278 : f32 to vector<8x256xf32>
    %280 = arith.mulf %279, %265 : vector<8x256xf32>
    %281 = arith.addf %255, %280 : vector<8x256xf32>
    %c14 = arith.constant 14 : index
    %282 = memref.load %arg3[%c14] : memref<72xf32, #tpu.memory_space<smem>>
    %283 = vector.broadcast %282 : f32 to vector<8x256xf32>
    %284 = arith.mulf %283, %265 : vector<8x256xf32>
    %285 = arith.addf %259, %284 : vector<8x256xf32>
    %c23 = arith.constant 23 : index
    %286 = memref.load %arg3[%c23] : memref<72xf32, #tpu.memory_space<smem>>
    %287 = vector.broadcast %286 : f32 to vector<8x256xf32>
    %288 = arith.mulf %287, %265 : vector<8x256xf32>
    %289 = arith.addf %263, %288 : vector<8x256xf32>
    %c1_179 = arith.constant 1 : index
    %c3_180 = arith.constant 3 : index
    %c0_181 = arith.constant 0 : index
    %c0_182 = arith.constant 0 : index
    %290 = vector.load %arg8[%c1_179, %c3_180, %c0_181, %c0_182] : memref<3x4x8x256xf32, #tpu.memory_space<vmem>>, vector<1x1x8x256xf32>
    %291 = vector.shape_cast %290 : vector<1x1x8x256xf32> to vector<8x256xf32>
    %c36 = arith.constant 36 : index
    %292 = memref.load %arg3[%c36] : memref<72xf32, #tpu.memory_space<smem>>
    %293 = vector.broadcast %292 : f32 to vector<8x256xf32>
    %294 = arith.mulf %293, %291 : vector<8x256xf32>
    %295 = arith.addf %269, %294 : vector<8x256xf32>
    %c51 = arith.constant 51 : index
    %296 = memref.load %arg3[%c51] : memref<72xf32, #tpu.memory_space<smem>>
    %297 = vector.broadcast %296 : f32 to vector<8x256xf32>
    %298 = arith.mulf %297, %291 : vector<8x256xf32>
    %299 = arith.addf %273, %298 : vector<8x256xf32>
    %c66 = arith.constant 66 : index
    %300 = memref.load %arg3[%c66] : memref<72xf32, #tpu.memory_space<smem>>
    %301 = vector.broadcast %300 : f32 to vector<8x256xf32>
    %302 = arith.mulf %301, %291 : vector<8x256xf32>
    %303 = arith.addf %277, %302 : vector<8x256xf32>
    %c2_183 = arith.constant 2 : index
    %c0_184 = arith.constant 0 : index
    %c0_185 = arith.constant 0 : index
    %c0_186 = arith.constant 0 : index
    %304 = vector.load %arg8[%c2_183, %c0_184, %c0_185, %c0_186] : memref<3x4x8x256xf32, #tpu.memory_space<vmem>>, vector<1x1x8x256xf32>
    %305 = vector.shape_cast %304 : vector<1x1x8x256xf32> to vector<8x256xf32>
    %c37 = arith.constant 37 : index
    %306 = memref.load %arg3[%c37] : memref<72xf32, #tpu.memory_space<smem>>
    %307 = vector.broadcast %306 : f32 to vector<8x256xf32>
    %308 = arith.mulf %307, %305 : vector<8x256xf32>
    %309 = arith.addf %295, %308 : vector<8x256xf32>
    %c52 = arith.constant 52 : index
    %310 = memref.load %arg3[%c52] : memref<72xf32, #tpu.memory_space<smem>>
    %311 = vector.broadcast %310 : f32 to vector<8x256xf32>
    %312 = arith.mulf %311, %305 : vector<8x256xf32>
    %313 = arith.addf %299, %312 : vector<8x256xf32>
    %c67 = arith.constant 67 : index
    %314 = memref.load %arg3[%c67] : memref<72xf32, #tpu.memory_space<smem>>
    %315 = vector.broadcast %314 : f32 to vector<8x256xf32>
    %316 = arith.mulf %315, %305 : vector<8x256xf32>
    %317 = arith.addf %303, %316 : vector<8x256xf32>
    %c2_187 = arith.constant 2 : index
    %c1_188 = arith.constant 1 : index
    %c0_189 = arith.constant 0 : index
    %c0_190 = arith.constant 0 : index
    %318 = vector.load %arg8[%c2_187, %c1_188, %c0_189, %c0_190] : memref<3x4x8x256xf32, #tpu.memory_space<vmem>>, vector<1x1x8x256xf32>
    %319 = vector.shape_cast %318 : vector<1x1x8x256xf32> to vector<8x256xf32>
    %c38 = arith.constant 38 : index
    %320 = memref.load %arg3[%c38] : memref<72xf32, #tpu.memory_space<smem>>
    %321 = vector.broadcast %320 : f32 to vector<8x256xf32>
    %322 = arith.mulf %321, %319 : vector<8x256xf32>
    %323 = arith.addf %309, %322 : vector<8x256xf32>
    %c53 = arith.constant 53 : index
    %324 = memref.load %arg3[%c53] : memref<72xf32, #tpu.memory_space<smem>>
    %325 = vector.broadcast %324 : f32 to vector<8x256xf32>
    %326 = arith.mulf %325, %319 : vector<8x256xf32>
    %327 = arith.addf %313, %326 : vector<8x256xf32>
    %c68 = arith.constant 68 : index
    %328 = memref.load %arg3[%c68] : memref<72xf32, #tpu.memory_space<smem>>
    %329 = vector.broadcast %328 : f32 to vector<8x256xf32>
    %330 = arith.mulf %329, %319 : vector<8x256xf32>
    %331 = arith.addf %317, %330 : vector<8x256xf32>
    %c6_191 = arith.constant 6 : index
    %332 = memref.load %arg3[%c6_191] : memref<72xf32, #tpu.memory_space<smem>>
    %333 = vector.broadcast %332 : f32 to vector<8x256xf32>
    %334 = arith.mulf %333, %319 : vector<8x256xf32>
    %335 = arith.addf %281, %334 : vector<8x256xf32>
    %c15 = arith.constant 15 : index
    %336 = memref.load %arg3[%c15] : memref<72xf32, #tpu.memory_space<smem>>
    %337 = vector.broadcast %336 : f32 to vector<8x256xf32>
    %338 = arith.mulf %337, %319 : vector<8x256xf32>
    %339 = arith.addf %285, %338 : vector<8x256xf32>
    %c24 = arith.constant 24 : index
    %340 = memref.load %arg3[%c24] : memref<72xf32, #tpu.memory_space<smem>>
    %341 = vector.broadcast %340 : f32 to vector<8x256xf32>
    %342 = arith.mulf %341, %319 : vector<8x256xf32>
    %343 = arith.addf %289, %342 : vector<8x256xf32>
    %c0_192 = arith.constant 0 : index
    %c2_193 = arith.constant 2 : index
    %c0_194 = arith.constant 0 : index
    %c0_195 = arith.constant 0 : index
    %344 = vector.load %arg2[%c0_192, %c2_193, %c0_194, %c0_195] : memref<1x3x8x256xf32, #tpu.memory_space<vmem>>, vector<1x1x8x256xf32>
    %345 = vector.shape_cast %344 : vector<1x1x8x256xf32> to vector<8x256xf32>
    %c39 = arith.constant 39 : index
    %346 = memref.load %arg3[%c39] : memref<72xf32, #tpu.memory_space<smem>>
    %347 = vector.broadcast %346 : f32 to vector<8x256xf32>
    %348 = arith.mulf %347, %345 : vector<8x256xf32>
    %349 = arith.addf %323, %348 : vector<8x256xf32>
    %c54 = arith.constant 54 : index
    %350 = memref.load %arg3[%c54] : memref<72xf32, #tpu.memory_space<smem>>
    %351 = vector.broadcast %350 : f32 to vector<8x256xf32>
    %352 = arith.mulf %351, %345 : vector<8x256xf32>
    %353 = arith.addf %327, %352 : vector<8x256xf32>
    %c69 = arith.constant 69 : index
    %354 = memref.load %arg3[%c69] : memref<72xf32, #tpu.memory_space<smem>>
    %355 = vector.broadcast %354 : f32 to vector<8x256xf32>
    %356 = arith.mulf %355, %345 : vector<8x256xf32>
    %357 = arith.addf %331, %356 : vector<8x256xf32>
    %c7_196 = arith.constant 7 : index
    %358 = memref.load %arg3[%c7_196] : memref<72xf32, #tpu.memory_space<smem>>
    %359 = vector.broadcast %358 : f32 to vector<8x256xf32>
    %360 = arith.mulf %359, %345 : vector<8x256xf32>
    %361 = arith.addf %335, %360 : vector<8x256xf32>
    %c16 = arith.constant 16 : index
    %362 = memref.load %arg3[%c16] : memref<72xf32, #tpu.memory_space<smem>>
    %363 = vector.broadcast %362 : f32 to vector<8x256xf32>
    %364 = arith.mulf %363, %345 : vector<8x256xf32>
    %365 = arith.addf %339, %364 : vector<8x256xf32>
    %c25 = arith.constant 25 : index
    %366 = memref.load %arg3[%c25] : memref<72xf32, #tpu.memory_space<smem>>
    %367 = vector.broadcast %366 : f32 to vector<8x256xf32>
    %368 = arith.mulf %367, %345 : vector<8x256xf32>
    %369 = arith.addf %343, %368 : vector<8x256xf32>
    %c2_197 = arith.constant 2 : index
    %c2_198 = arith.constant 2 : index
    %c0_199 = arith.constant 0 : index
    %c0_200 = arith.constant 0 : index
    %370 = vector.load %arg8[%c2_197, %c2_198, %c0_199, %c0_200] : memref<3x4x8x256xf32, #tpu.memory_space<vmem>>, vector<1x1x8x256xf32>
    %371 = vector.shape_cast %370 : vector<1x1x8x256xf32> to vector<8x256xf32>
    %c40 = arith.constant 40 : index
    %372 = memref.load %arg3[%c40] : memref<72xf32, #tpu.memory_space<smem>>
    %373 = vector.broadcast %372 : f32 to vector<8x256xf32>
    %374 = arith.mulf %373, %371 : vector<8x256xf32>
    %375 = arith.addf %349, %374 : vector<8x256xf32>
    %c55 = arith.constant 55 : index
    %376 = memref.load %arg3[%c55] : memref<72xf32, #tpu.memory_space<smem>>
    %377 = vector.broadcast %376 : f32 to vector<8x256xf32>
    %378 = arith.mulf %377, %371 : vector<8x256xf32>
    %379 = arith.addf %353, %378 : vector<8x256xf32>
    %c70 = arith.constant 70 : index
    %380 = memref.load %arg3[%c70] : memref<72xf32, #tpu.memory_space<smem>>
    %381 = vector.broadcast %380 : f32 to vector<8x256xf32>
    %382 = arith.mulf %381, %371 : vector<8x256xf32>
    %383 = arith.addf %357, %382 : vector<8x256xf32>
    %c8 = arith.constant 8 : index
    %384 = memref.load %arg3[%c8] : memref<72xf32, #tpu.memory_space<smem>>
    %385 = vector.broadcast %384 : f32 to vector<8x256xf32>
    %386 = arith.mulf %385, %371 : vector<8x256xf32>
    %387 = arith.addf %361, %386 : vector<8x256xf32>
    %c17 = arith.constant 17 : index
    %388 = memref.load %arg3[%c17] : memref<72xf32, #tpu.memory_space<smem>>
    %389 = vector.broadcast %388 : f32 to vector<8x256xf32>
    %390 = arith.mulf %389, %371 : vector<8x256xf32>
    %391 = arith.addf %365, %390 : vector<8x256xf32>
    %c26 = arith.constant 26 : index
    %392 = memref.load %arg3[%c26] : memref<72xf32, #tpu.memory_space<smem>>
    %393 = vector.broadcast %392 : f32 to vector<8x256xf32>
    %394 = arith.mulf %393, %371 : vector<8x256xf32>
    %395 = arith.addf %369, %394 : vector<8x256xf32>
    %c2_201 = arith.constant 2 : index
    %c3_202 = arith.constant 3 : index
    %c0_203 = arith.constant 0 : index
    %c0_204 = arith.constant 0 : index
    %396 = vector.load %arg8[%c2_201, %c3_202, %c0_203, %c0_204] : memref<3x4x8x256xf32, #tpu.memory_space<vmem>>, vector<1x1x8x256xf32>
    %397 = vector.shape_cast %396 : vector<1x1x8x256xf32> to vector<8x256xf32>
    %c41 = arith.constant 41 : index
    %398 = memref.load %arg3[%c41] : memref<72xf32, #tpu.memory_space<smem>>
    %399 = vector.broadcast %398 : f32 to vector<8x256xf32>
    %400 = arith.mulf %399, %397 : vector<8x256xf32>
    %401 = arith.addf %375, %400 : vector<8x256xf32>
    %c56 = arith.constant 56 : index
    %402 = memref.load %arg3[%c56] : memref<72xf32, #tpu.memory_space<smem>>
    %403 = vector.broadcast %402 : f32 to vector<8x256xf32>
    %404 = arith.mulf %403, %397 : vector<8x256xf32>
    %405 = arith.addf %379, %404 : vector<8x256xf32>
    %c71 = arith.constant 71 : index
    %406 = memref.load %arg3[%c71] : memref<72xf32, #tpu.memory_space<smem>>
    %407 = vector.broadcast %406 : f32 to vector<8x256xf32>
    %408 = arith.mulf %407, %397 : vector<8x256xf32>
    %409 = arith.addf %383, %408 : vector<8x256xf32>
    %c0_205 = arith.constant 0 : index
    %410 = memref.load %arg4[%c0_205] : memref<6xf32, #tpu.memory_space<smem>>
    %411 = vector.broadcast %410 : f32 to vector<8x256xf32>
    %412 = arith.addf %387, %411 : vector<8x256xf32>
    %cst_206 = arith.constant 0.000000e+00 : f32
    %413 = vector.broadcast %cst_206 : f32 to vector<8x256xf32>
    %414 = arith.maximumf %412, %413 : vector<8x256xf32>
    %c0_207 = arith.constant 0 : index
    %415 = memref.load %arg5[%c0_207] : memref<18xf32, #tpu.memory_space<smem>>
    %416 = vector.broadcast %415 : f32 to vector<8x256xf32>
    %417 = arith.mulf %416, %414 : vector<8x256xf32>
    %c6_208 = arith.constant 6 : index
    %418 = memref.load %arg5[%c6_208] : memref<18xf32, #tpu.memory_space<smem>>
    %419 = vector.broadcast %418 : f32 to vector<8x256xf32>
    %420 = arith.mulf %419, %414 : vector<8x256xf32>
    %c12_209 = arith.constant 12 : index
    %421 = memref.load %arg5[%c12_209] : memref<18xf32, #tpu.memory_space<smem>>
    %422 = vector.broadcast %421 : f32 to vector<8x256xf32>
    %423 = arith.mulf %422, %414 : vector<8x256xf32>
    %c1_210 = arith.constant 1 : index
    %424 = memref.load %arg4[%c1_210] : memref<6xf32, #tpu.memory_space<smem>>
    %425 = vector.broadcast %424 : f32 to vector<8x256xf32>
    %426 = arith.addf %391, %425 : vector<8x256xf32>
    %cst_211 = arith.constant 0.000000e+00 : f32
    %427 = vector.broadcast %cst_211 : f32 to vector<8x256xf32>
    %428 = arith.maximumf %426, %427 : vector<8x256xf32>
    %c1_212 = arith.constant 1 : index
    %429 = memref.load %arg5[%c1_212] : memref<18xf32, #tpu.memory_space<smem>>
    %430 = vector.broadcast %429 : f32 to vector<8x256xf32>
    %431 = arith.mulf %430, %428 : vector<8x256xf32>
    %432 = arith.addf %417, %431 : vector<8x256xf32>
    %c7_213 = arith.constant 7 : index
    %433 = memref.load %arg5[%c7_213] : memref<18xf32, #tpu.memory_space<smem>>
    %434 = vector.broadcast %433 : f32 to vector<8x256xf32>
    %435 = arith.mulf %434, %428 : vector<8x256xf32>
    %436 = arith.addf %420, %435 : vector<8x256xf32>
    %c13_214 = arith.constant 13 : index
    %437 = memref.load %arg5[%c13_214] : memref<18xf32, #tpu.memory_space<smem>>
    %438 = vector.broadcast %437 : f32 to vector<8x256xf32>
    %439 = arith.mulf %438, %428 : vector<8x256xf32>
    %440 = arith.addf %423, %439 : vector<8x256xf32>
    %c2_215 = arith.constant 2 : index
    %441 = memref.load %arg4[%c2_215] : memref<6xf32, #tpu.memory_space<smem>>
    %442 = vector.broadcast %441 : f32 to vector<8x256xf32>
    %443 = arith.addf %395, %442 : vector<8x256xf32>
    %cst_216 = arith.constant 0.000000e+00 : f32
    %444 = vector.broadcast %cst_216 : f32 to vector<8x256xf32>
    %445 = arith.maximumf %443, %444 : vector<8x256xf32>
    %c2_217 = arith.constant 2 : index
    %446 = memref.load %arg5[%c2_217] : memref<18xf32, #tpu.memory_space<smem>>
    %447 = vector.broadcast %446 : f32 to vector<8x256xf32>
    %448 = arith.mulf %447, %445 : vector<8x256xf32>
    %449 = arith.addf %432, %448 : vector<8x256xf32>
    %c8_218 = arith.constant 8 : index
    %450 = memref.load %arg5[%c8_218] : memref<18xf32, #tpu.memory_space<smem>>
    %451 = vector.broadcast %450 : f32 to vector<8x256xf32>
    %452 = arith.mulf %451, %445 : vector<8x256xf32>
    %453 = arith.addf %436, %452 : vector<8x256xf32>
    %c14_219 = arith.constant 14 : index
    %454 = memref.load %arg5[%c14_219] : memref<18xf32, #tpu.memory_space<smem>>
    %455 = vector.broadcast %454 : f32 to vector<8x256xf32>
    %456 = arith.mulf %455, %445 : vector<8x256xf32>
    %457 = arith.addf %440, %456 : vector<8x256xf32>
    %c3_220 = arith.constant 3 : index
    %458 = memref.load %arg4[%c3_220] : memref<6xf32, #tpu.memory_space<smem>>
    %459 = vector.broadcast %458 : f32 to vector<8x256xf32>
    %460 = arith.addf %401, %459 : vector<8x256xf32>
    %cst_221 = arith.constant 0.000000e+00 : f32
    %461 = vector.broadcast %cst_221 : f32 to vector<8x256xf32>
    %462 = arith.maximumf %460, %461 : vector<8x256xf32>
    %c3_222 = arith.constant 3 : index
    %463 = memref.load %arg5[%c3_222] : memref<18xf32, #tpu.memory_space<smem>>
    %464 = vector.broadcast %463 : f32 to vector<8x256xf32>
    %465 = arith.mulf %464, %462 : vector<8x256xf32>
    %466 = arith.addf %449, %465 : vector<8x256xf32>
    %c9_223 = arith.constant 9 : index
    %467 = memref.load %arg5[%c9_223] : memref<18xf32, #tpu.memory_space<smem>>
    %468 = vector.broadcast %467 : f32 to vector<8x256xf32>
    %469 = arith.mulf %468, %462 : vector<8x256xf32>
    %470 = arith.addf %453, %469 : vector<8x256xf32>
    %c15_224 = arith.constant 15 : index
    %471 = memref.load %arg5[%c15_224] : memref<18xf32, #tpu.memory_space<smem>>
    %472 = vector.broadcast %471 : f32 to vector<8x256xf32>
    %473 = arith.mulf %472, %462 : vector<8x256xf32>
    %474 = arith.addf %457, %473 : vector<8x256xf32>
    %c4_225 = arith.constant 4 : index
    %475 = memref.load %arg4[%c4_225] : memref<6xf32, #tpu.memory_space<smem>>
    %476 = vector.broadcast %475 : f32 to vector<8x256xf32>
    %477 = arith.addf %405, %476 : vector<8x256xf32>
    %cst_226 = arith.constant 0.000000e+00 : f32
    %478 = vector.broadcast %cst_226 : f32 to vector<8x256xf32>
    %479 = arith.maximumf %477, %478 : vector<8x256xf32>
    %c4_227 = arith.constant 4 : index
    %480 = memref.load %arg5[%c4_227] : memref<18xf32, #tpu.memory_space<smem>>
    %481 = vector.broadcast %480 : f32 to vector<8x256xf32>
    %482 = arith.mulf %481, %479 : vector<8x256xf32>
    %483 = arith.addf %466, %482 : vector<8x256xf32>
    %c10_228 = arith.constant 10 : index
    %484 = memref.load %arg5[%c10_228] : memref<18xf32, #tpu.memory_space<smem>>
    %485 = vector.broadcast %484 : f32 to vector<8x256xf32>
    %486 = arith.mulf %485, %479 : vector<8x256xf32>
    %487 = arith.addf %470, %486 : vector<8x256xf32>
    %c16_229 = arith.constant 16 : index
    %488 = memref.load %arg5[%c16_229] : memref<18xf32, #tpu.memory_space<smem>>
    %489 = vector.broadcast %488 : f32 to vector<8x256xf32>
    %490 = arith.mulf %489, %479 : vector<8x256xf32>
    %491 = arith.addf %474, %490 : vector<8x256xf32>
    %c5_230 = arith.constant 5 : index
    %492 = memref.load %arg4[%c5_230] : memref<6xf32, #tpu.memory_space<smem>>
    %493 = vector.broadcast %492 : f32 to vector<8x256xf32>
    %494 = arith.addf %409, %493 : vector<8x256xf32>
    %cst_231 = arith.constant 0.000000e+00 : f32
    %495 = vector.broadcast %cst_231 : f32 to vector<8x256xf32>
    %496 = arith.maximumf %494, %495 : vector<8x256xf32>
    %c5_232 = arith.constant 5 : index
    %497 = memref.load %arg5[%c5_232] : memref<18xf32, #tpu.memory_space<smem>>
    %498 = vector.broadcast %497 : f32 to vector<8x256xf32>
    %499 = arith.mulf %498, %496 : vector<8x256xf32>
    %500 = arith.addf %483, %499 : vector<8x256xf32>
    %c11_233 = arith.constant 11 : index
    %501 = memref.load %arg5[%c11_233] : memref<18xf32, #tpu.memory_space<smem>>
    %502 = vector.broadcast %501 : f32 to vector<8x256xf32>
    %503 = arith.mulf %502, %496 : vector<8x256xf32>
    %504 = arith.addf %487, %503 : vector<8x256xf32>
    %c17_234 = arith.constant 17 : index
    %505 = memref.load %arg5[%c17_234] : memref<18xf32, #tpu.memory_space<smem>>
    %506 = vector.broadcast %505 : f32 to vector<8x256xf32>
    %507 = arith.mulf %506, %496 : vector<8x256xf32>
    %508 = arith.addf %491, %507 : vector<8x256xf32>
    %c0_235 = arith.constant 0 : index
    %509 = memref.load %arg6[%c0_235] : memref<3xf32, #tpu.memory_space<smem>>
    %510 = vector.broadcast %509 : f32 to vector<8x256xf32>
    %511 = arith.addf %500, %510 : vector<8x256xf32>
    %c0_236 = arith.constant 0 : index
    %c0_237 = arith.constant 0 : index
    %c0_238 = arith.constant 0 : index
    %c0_239 = arith.constant 0 : index
    %512 = vector.load %arg7[%c0_236, %c0_237, %c0_238, %c0_239] : memref<1x3x8x256xf32, #tpu.memory_space<vmem>>, vector<1x1x8x256xf32>
    %513 = vector.shape_cast %512 : vector<1x1x8x256xf32> to vector<8x256xf32>
    %514 = vector.shape_cast %511 : vector<8x256xf32> to vector<1x1x8x256xf32>
    tpu.vector_store %arg7[%c0_236, %c0_237, %c0_238, %c0_239], %514 {strides = array<i32>} : memref<1x3x8x256xf32, #tpu.memory_space<vmem>>, vector<1x1x8x256xf32>,
    %c1_240 = arith.constant 1 : index
    %515 = memref.load %arg6[%c1_240] : memref<3xf32, #tpu.memory_space<smem>>
    %516 = vector.broadcast %515 : f32 to vector<8x256xf32>
    %517 = arith.addf %504, %516 : vector<8x256xf32>
    %c0_241 = arith.constant 0 : index
    %c1_242 = arith.constant 1 : index
    %c0_243 = arith.constant 0 : index
    %c0_244 = arith.constant 0 : index
    %518 = vector.load %arg7[%c0_241, %c1_242, %c0_243, %c0_244] : memref<1x3x8x256xf32, #tpu.memory_space<vmem>>, vector<1x1x8x256xf32>
    %519 = vector.shape_cast %518 : vector<1x1x8x256xf32> to vector<8x256xf32>
    %520 = vector.shape_cast %517 : vector<8x256xf32> to vector<1x1x8x256xf32>
    tpu.vector_store %arg7[%c0_241, %c1_242, %c0_243, %c0_244], %520 {strides = array<i32>} : memref<1x3x8x256xf32, #tpu.memory_space<vmem>>, vector<1x1x8x256xf32>,
    %c2_245 = arith.constant 2 : index
    %521 = memref.load %arg6[%c2_245] : memref<3xf32, #tpu.memory_space<smem>>
    %522 = vector.broadcast %521 : f32 to vector<8x256xf32>
    %523 = arith.addf %508, %522 : vector<8x256xf32>
    %c0_246 = arith.constant 0 : index
    %c2_247 = arith.constant 2 : index
    %c0_248 = arith.constant 0 : index
    %c0_249 = arith.constant 0 : index
    %524 = vector.load %arg7[%c0_246, %c2_247, %c0_248, %c0_249] : memref<1x3x8x256xf32, #tpu.memory_space<vmem>>, vector<1x1x8x256xf32>
    %525 = vector.shape_cast %524 : vector<1x1x8x256xf32> to vector<8x256xf32>
    %526 = vector.shape_cast %523 : vector<8x256xf32> to vector<1x1x8x256xf32>
    tpu.vector_store %arg7[%c0_246, %c2_247, %c0_248, %c0_249], %526 {strides = array<i32>} : memref<1x3x8x256xf32, #tpu.memory_space<vmem>>, vector<1x1x8x256xf32>,
    return
  }
  func.func @transform_0(%arg0: i32, %arg1: i32) -> (i32, i32, i32, i32) {
    %c0_i32 = arith.constant 0 : i32
    %c0_i32_0 = arith.constant 0 : i32
    %c0_i32_1 = arith.constant 0 : i32
    return %arg0, %c0_i32, %c0_i32_0, %arg1 : i32, i32, i32, i32
  }
  func.func @transform_1(%arg0: i32, %arg1: i32) -> i32 {
    %c0_i32 = arith.constant 0 : i32
    %c0_i32_0 = arith.constant 0 : i32
    return %c0_i32 : i32
  }
  func.func @transform_2(%arg0: i32, %arg1: i32) -> i32 {
    %c0_i32 = arith.constant 0 : i32
    %c0_i32_0 = arith.constant 0 : i32
    return %c0_i32 : i32
  }
  func.func @transform_3(%arg0: i32, %arg1: i32) -> i32 {
    %c0_i32 = arith.constant 0 : i32
    %c0_i32_0 = arith.constant 0 : i32
    return %c0_i32 : i32
  }
  func.func @transform_4(%arg0: i32, %arg1: i32) -> i32 {
    %c0_i32 = arith.constant 0 : i32
    %c0_i32_0 = arith.constant 0 : i32
    return %c0_i32 : i32
  }
  func.func @transform_5(%arg0: i32, %arg1: i32) -> (i32, i32, i32, i32) {
    %c0_i32 = arith.constant 0 : i32
    %c0_i32_0 = arith.constant 0 : i32
    %c0_i32_1 = arith.constant 0 : i32
    return %arg0, %c0_i32, %c0_i32_0, %arg1 : i32, i32, i32, i32
  }
}

</mosaic_0001>

<llo_original>
// kernel: tpu_custom_call.1
$region0: #{tpu_custom_call.1}
  #allocation0 [shape = 'u32[]', space=smem, size = 0x4, offset = 0x4, fixed_abs, tag = 'smem constant byte address 0x4 - core index']
  #allocation1 [shape = 'u32[72,128]{1,0:T(1,128)}', space=vmem, size = 0x9000, scoped, tag = 'internal scratch']
  #allocation2 [shape = 'f32[3,4,8,256]{3,2,1,0:T(8,128)}', space=vmem, size = 0x18000, scoped, tag = 'scratch operand']
  %s0 = inlined_call_operand.hbm [shape: f32[2,3,8,256], index: 0, kind: input, shape index: {}]
  %s1 = inlined_call_operand.hbm [shape: f32[72], index: 1, kind: input, shape index: {}]
  %s2 = inlined_call_operand.vmem [shape: f32[6], index: 2, kind: input, shape index: {}]
  %s3 = inlined_call_operand.vmem [shape: f32[18], index: 3, kind: input, shape index: {}]
  %s4 = inlined_call_operand.vmem [shape: f32[3], index: 4, kind: input, shape index: {}]
  %s5 = inlined_call_operand.hbm [shape: f32[2,3,8,256], index: 5, kind: output, shape index: {}]
  %s6 = sld [smem:[#allocation0]]
  $region73: #{tpu_custom_call.1} parent=0
    _
  %s8 = ssub.s32 1, %s6
  %s9 = scalar_select 0, %s8, %s6
  $region1: #{tpu_custom_call.1} parent=0
    #allocation3 [shape = 'u8[49152]{0}', space=vmem, size = 0xc000, scoped, tag = 'input window, operand 0']
    #allocation4 [shape = 's32[2]{0}', space=sflag, size = 0x8, scoped, tag = 'scoped memory for tpu_custom_call.1']
    #allocation5 [shape = 's32[2]{0}', space=sflag, size = 0x8, scoped, tag = 'scoped memory for tpu_custom_call.1']
    #allocation6 [shape = 's32[2]{0}', space=sflag, size = 0x8, scoped, tag = 'scoped memory for tpu_custom_call.1']
    #allocation7 [shape = 's32[2]{0}', space=sflag, size = 0x8, scoped, tag = 'scoped memory for tpu_custom_call.1']
    #allocation8 [shape = 'u8[512]{0}', space=smem, size = 0x200, scoped, tag = 'input window, operand 1, single buffered']
    #allocation9 [shape = 'u8[512]{0}', space=smem, size = 0x200, scoped, tag = 'input window, operand 2, single buffered']
    #allocation10 [shape = 'u8[512]{0}', space=smem, size = 0x200, scoped, tag = 'input window, operand 3, single buffered']
    #allocation11 [shape = 's32[1]{0}', space=sflag, size = 0x4, scoped, tag = 'scoped memory for tpu_custom_call.1']
    #allocation12 [shape = 'u8[512]{0}', space=smem, size = 0x200, scoped, tag = 'input window, operand 4, single buffered']
    #allocation13 [shape = 'u8[49152]{0}', space=vmem, size = 0xc000, scoped, tag = 'output window, operand 0']
    %10 = vsyncpa [#allocation4], 0
    %s11 = scalar_lea.sflag [#allocation4], 1
    %12 = vsyncpa %s11, 0
    %13 = vsyncpa [#allocation6], 0
    %14 = vsyncpa [#allocation7], 0
    %15 = vsyncpa [#allocation11], 0
    %16 = vsyncpa [#allocation5], 0
    %s17 = scalar_lea.sflag [#allocation5], 1
    %18 = vsyncpa %s17, 0
    loop: start=0, step=1, limit=4
    $region2: #{tpu_custom_call.1} parent=1 // loop_pre_header
      _
    $region3: #{tpu_custom_call.1} parent=1 // loop_header
      %s20 = sphi 0, %s24
      %p21 = scmp.ge.s32.totalorder %s20, 4
      %s27 = sphi 0, %s39
      %s28 = sphi 0, %s35
      %s29 = sphi 0, %s27
      %s30 = sphi 0, %s28
      %s31 = sphi 0, %s29
      %s32 = sphi 0, %s30
      %s44 = sphi 0, %s46
      %s47 = sphi 0, %s44
      %s48 = sphi 0, %s47
      %s64 = sphi 0, %s48
      %s68 = sphi 0, %s68
      %s70 = sphi 0, %s68
      %s71 = sphi 0, %s70
      %s85 = sphi 0, %s71
      %s89 = sphi 0, %s89
      %s91 = sphi 0, %s89
      %s92 = sphi 0, %s91
      %s106 = sphi 0, %s92
      %s110 = sphi 0, %s110
      %s112 = sphi 0, %s110
      %s113 = sphi 0, %s112
      %s127 = sphi 0, %s113
      %s131 = sphi 0, %s131
      %s133 = sphi 0, %s131
      %s134 = sphi 0, %s133
      %s148 = sphi 0, %s134
      %s156 = sphi 0, %s158
      %s159 = sphi 0, %s156
      %s160 = sphi 0, %s159
      %s176 = sphi 0, %s160
    $region4: #{tpu_custom_call.1} parent=1 // loop_header_branch
      %23 = sbr.rel (%p21) target = $region8
    $region5: #{tpu_custom_call.1} parent=1 // loop_body
      %s25 = ssub.s32 %s20, 1
      %s26 = ssub.s32 %s20, 2
      %s33 = sadd.s32 1, %s28
      %p34 = scmp.ge.s32.totalorder %s33, 1
      %s35 = scalar_select %p34, 0, %s33
      %s36 = sadd.s32 1, %s27
      %s37 = scalar_select %p34, %s36, %s27
      %p38 = scmp.ge.s32.totalorder %s37, 2
      %s39 = scalar_select %p38, 0, %s37
      %s40 = ssub.s32 %s27, %s39
      %s41 = ssub.s32 %s28, %s35
      %s42 = sor.u32 %s40, %s41
      %p43 = scmp.eq.s32.totalorder %s42, 0
      %s45 = sadd.s32 %s44, 1
      %s46 = scalar_select %p43, %s44, %s45
      %p49 = pneg %p43
      %p50 = scmp.eq.s32.totalorder %s20, 1
      %p51 = por %p49, %p50
      %p52 = scmp.ne.s32.totalorder %s44, %s47
      %p53 = scmp.eq.s32.totalorder %s20, 0
      %p54 = por %p52, %p53
      %p55 = scmp.ne.s32.totalorder %s44, %s47
      %p56 = scmp.eq.s32.totalorder %s25, 1
      %p57 = por %p55, %p56
      %p58 = scmp.ne.s32.totalorder %s47, %s48
      %p59 = scmp.eq.s32.totalorder %s25, 0
      %p60 = por %p58, %p59
      %p61 = scmp.ne.s32.totalorder %s47, %s48
      %p62 = scmp.eq.s32.totalorder %s26, 1
      %p63 = por %p61, %p62
      %p65 = scmp.ne.s32.totalorder %s48, %s64
      %p66 = scmp.eq.s32.totalorder %s26, 0
      %p67 = por %p65, %p66
      %s69 = sadd.s32 %s68, 1
      %p72 = scmp.eq.s32.totalorder %s20, 1
      %p73 = scmp.ne.s32.totalorder %s68, %s70
      %p74 = scmp.eq.s32.totalorder %s20, 0
      %p75 = por %p73, %p74
      %p76 = scmp.ne.s32.totalorder %s68, %s70
      %p77 = scmp.eq.s32.totalorder %s25, 1
      %p78 = por %p76, %p77
      %p79 = scmp.ne.s32.totalorder %s70, %s71
      %p80 = scmp.eq.s32.totalorder %s25, 0
      %p81 = por %p79, %p80
      %p82 = scmp.ne.s32.totalorder %s70, %s71
      %p83 = scmp.eq.s32.totalorder %s26, 1
      %p84 = por %p82, %p83
      %p86 = scmp.ne.s32.totalorder %s71, %s85
      %p87 = scmp.eq.s32.totalorder %s26, 0
      %p88 = por %p86, %p87
      %s90 = sadd.s32 %s89, 1
      %p93 = scmp.eq.s32.totalorder %s20, 1
      %p94 = scmp.ne.s32.totalorder %s89, %s91
      %p95 = scmp.eq.s32.totalorder %s20, 0
      %p96 = por %p94, %p95
      %p97 = scmp.ne.s32.totalorder %s89, %s91
      %p98 = scmp.eq.s32.totalorder %s25, 1
      %p99 = por %p97, %p98
      %p100 = scmp.ne.s32.totalorder %s91, %s92
      %p101 = scmp.eq.s32.totalorder %s25, 0
      %p102 = por %p100, %p101
      %p103 = scmp.ne.s32.totalorder %s91, %s92
      %p104 = scmp.eq.s32.totalorder %s26, 1
      %p105 = por %p103, %p104
      %p107 = scmp.ne.s32.totalorder %s92, %s106
      %p108 = scmp.eq.s32.totalorder %s26, 0
      %p109 = por %p107, %p108
      %s111 = sadd.s32 %s110, 1
      %p114 = scmp.eq.s32.totalorder %s20, 1
      %p115 = scmp.ne.s32.totalorder %s110, %s112
      %p116 = scmp.eq.s32.totalorder %s20, 0
      %p117 = por %p115, %p116
      %p118 = scmp.ne.s32.totalorder %s110, %s112
      %p119 = scmp.eq.s32.totalorder %s25, 1
      %p120 = por %p118, %p119
      %p121 = scmp.ne.s32.totalorder %s112, %s113
      %p122 = scmp.eq.s32.totalorder %s25, 0
      %p123 = por %p121, %p122
      %p124 = scmp.ne.s32.totalorder %s112, %s113
      %p125 = scmp.eq.s32.totalorder %s26, 1
      %p126 = por %p124, %p125
      %p128 = scmp.ne.s32.totalorder %s113, %s127
      %p129 = scmp.eq.s32.totalorder %s26, 0
      %p130 = por %p128, %p129
      %s132 = sadd.s32 %s131, 1
      %p135 = scmp.eq.s32.totalorder %s20, 1
      %p136 = scmp.ne.s32.totalorder %s131, %s133
      %p137 = scmp.eq.s32.totalorder %s20, 0
      %p138 = por %p136, %p137
      %p139 = scmp.ne.s32.totalorder %s131, %s133
      %p140 = scmp.eq.s32.totalorder %s25, 1
      %p141 = por %p139, %p140
      %p142 = scmp.ne.s32.totalorder %s133, %s134
      %p143 = scmp.eq.s32.totalorder %s25, 0
      %p144 = por %p142, %p143
      %p145 = scmp.ne.s32.totalorder %s133, %s134
      %p146 = scmp.eq.s32.totalorder %s26, 1
      %p147 = por %p145, %p146
      %p149 = scmp.ne.s32.totalorder %s134, %s148
      %p150 = scmp.eq.s32.totalorder %s26, 0
      %p151 = por %p149, %p150
      %s152 = ssub.s32 %s27, %s39
      %s153 = ssub.s32 %s28, %s35
      %s154 = sor.u32 %s152, %s153
      %p155 = scmp.eq.s32.totalorder %s154, 0
      %s157 = sadd.s32 %s156, 1
      %s158 = scalar_select %p155, %s156, %s157
      %p161 = pneg %p155
      %p162 = scmp.eq.s32.totalorder %s20, 1
      %p163 = por %p161, %p162
      %p164 = scmp.ne.s32.totalorder %s156, %s159
      %p165 = scmp.eq.s32.totalorder %s20, 0
      %p166 = por %p164, %p165
      %p167 = scmp.ne.s32.totalorder %s156, %s159
      %p168 = scmp.eq.s32.totalorder %s25, 1
      %p169 = por %p167, %p168
      %p170 = scmp.ne.s32.totalorder %s159, %s160
      %p171 = scmp.eq.s32.totalorder %s25, 0
      %p172 = por %p170, %p171
      %p173 = scmp.ne.s32.totalorder %s159, %s160
      %p174 = scmp.eq.s32.totalorder %s26, 1
      %p175 = por %p173, %p174
      %p177 = scmp.ne.s32.totalorder %s160, %s176
      %p178 = scmp.eq.s32.totalorder %s26, 0
      %p179 = por %p177, %p178
      %p180 = scmp.le.s32.totalorder 1, %s20
      %p181 = scmp.lt.s32.totalorder %s20, 3
      %p182 = pnand %p180, %p181
      %p183 = pneg %p182
      // Predicated region
      $region9: #{tpu_custom_call.1} parent=5 // pred_check
        _
      $region10: #{tpu_custom_call.1} parent=5 // pred_check_branch
        %185 = sbr.rel (%p182) target = $region12
      $region11: #{tpu_custom_call.1} parent=5 // pred_region
        %s186 = ssub.s32 %s20, 1
        // Predicated region
        $region13: #{tpu_custom_call.1} parent=11 // pred_check
          %p187 = pneg %p81
        $region14: #{tpu_custom_call.1} parent=11 // pred_check_branch
          %189 = sbr.rel (%p187) target = $region16
        $region15: #{tpu_custom_call.1} parent=11 // pred_region
          %191 = vsyncadd [#allocation6], 0
          %s193 = sshll.u32 %s1, 4
          %s194 = int_to_ptr.hbm [resolvable:$true] %s193
          %196 = dma.hbm_to_smem %s194, 16, [#allocation8], [#allocation6]
        $region16: #{tpu_custom_call.1} parent=11 // pred_fallthru
          _
        // Predicated region
        $region17: #{tpu_custom_call.1} parent=11 // pred_check
          %p197 = pneg %p102
        $region18: #{tpu_custom_call.1} parent=11 // pred_check_branch
          %199 = sbr.rel (%p197) target = $region20
        $region19: #{tpu_custom_call.1} parent=11 // pred_region
          %201 = vsyncadd [#allocation7], 0
          %s203 = sshll.u32 %s2, 4
          %s204 = int_to_ptr.vmem [resolvable:$true] %s203
          %206 = dma.vmem_to_smem %s204, 16, [#allocation9], [#allocation7]
        $region20: #{tpu_custom_call.1} parent=11 // pred_fallthru
          _
        // Predicated region
        $region21: #{tpu_custom_call.1} parent=11 // pred_check
          %p207 = pneg %p123
        $region22: #{tpu_custom_call.1} parent=11 // pred_check_branch
          %209 = sbr.rel (%p207) target = $region24
        $region23: #{tpu_custom_call.1} parent=11 // pred_region
          %211 = vsyncadd [#allocation11], 0
          %s213 = sshll.u32 %s3, 4
          %s214 = int_to_ptr.vmem [resolvable:$true] %s213
          %216 = dma.vmem_to_smem %s214, 16, [#allocation10], [#allocation11]
        $region24: #{tpu_custom_call.1} parent=11 // pred_fallthru
          _
        // Predicated region
        $region25: #{tpu_custom_call.1} parent=11 // pred_check
          %p217 = pneg %p144
        $region26: #{tpu_custom_call.1} parent=11 // pred_check_branch
          %219 = sbr.rel (%p217) target = $region28
        $region27: #{tpu_custom_call.1} parent=11 // pred_region
          %221 = vsyncadd [#allocation11], 0
          %s223 = sshll.u32 %s4, 4
          %s224 = int_to_ptr.vmem [resolvable:$true] %s223
          %226 = dma.vmem_to_smem %s224, 16, [#allocation12], [#allocation11]
        $region28: #{tpu_custom_call.1} parent=11 // pred_fallthru
          _
      $region12: #{tpu_custom_call.1} parent=5 // pred_fallthru
        _
      %p227 = scmp.lt.s32.totalorder %s20, 2
      // Predicated region
      $region29: #{tpu_custom_call.1} parent=5 // pred_check
        %p228 = pneg %p227
      $region30: #{tpu_custom_call.1} parent=5 // pred_check_branch
        %230 = sbr.rel (%p228) target = $region32
      $region31: #{tpu_custom_call.1} parent=5 // pred_region
        // Predicated region
        $region33: #{tpu_custom_call.1} parent=31 // pred_check
          %p231 = pneg %p54
        $region34: #{tpu_custom_call.1} parent=31 // pred_check_branch
          %233 = sbr.rel (%p231) target = $region36
        $region35: #{tpu_custom_call.1} parent=31 // pred_region
          %s234 = sand.u32 %s44, 1
          %s235 = scalar_lea.sflag [#allocation4], %s234
          %s236 = sand.u32 %s44, 1
          %s237 = smul.addr %s236, 48
          %s238 = scalar_lea.vmem [#allocation3], %s237
          %s239 = smul.u32 2, %s28
          %241 = vsyncadd %s235, 0
          %s242 = smul.addr %s27, 6
          %s243 = sadd.s32 %s239, %s242
          %s244 = smul.addr %s243, 8
          %s245 = scalar_lea.hbm %s0, %s244
          %s246 = sshll.u32 %s245, 4
          %s247 = int_to_ptr.hbm [resolvable:$true] %s246
          %s248 = sshll.u32 %s238, 4
          %s249 = int_to_ptr.vmem [resolvable:$true] %s248
          %254 = dma.hbm_to_vmem [thread:$0]  %s247, 768, %s249, %s235, 256, 256, 16
        $region36: #{tpu_custom_call.1} parent=31 // pred_fallthru
          _
      $region32: #{tpu_custom_call.1} parent=5 // pred_fallthru
        _
      %p255 = scmp.le.s32.totalorder 1, %s20
      %p256 = scmp.lt.s32.totalorder %s20, 3
      %p257 = pnand %p255, %p256
      %p258 = pneg %p257
      // Predicated region
      $region37: #{tpu_custom_call.1} parent=5 // pred_check
        _
      $region38: #{tpu_custom_call.1} parent=5 // pred_check_branch
        %260 = sbr.rel (%p257) target = $region40
      $region39: #{tpu_custom_call.1} parent=5 // pred_region
        %s261 = ssub.s32 %s20, 1
        %s262 = sand.u32 %s47, 1
        %s263 = scalar_lea.sflag [#allocation4], %s262
        %s264 = sand.u32 %s47, 1
        %s265 = smul.addr %s264, 48
        %s266 = scalar_lea.vmem [#allocation3], %s265
        // Predicated region
        $region41: #{tpu_custom_call.1} parent=39 // pred_check
          %p267 = pneg %p60
        $region42: #{tpu_custom_call.1} parent=39 // pred_check_branch
          %269 = sbr.rel (%p267) target = $region44
        $region43: #{tpu_custom_call.1} parent=39 // pred_region
          %271 = dma.done %s263, 768
        $region44: #{tpu_custom_call.1} parent=39 // pred_fallthru
          _
        // Predicated region
        $region45: #{tpu_custom_call.1} parent=39 // pred_check
          %p272 = pneg %p81
        $region46: #{tpu_custom_call.1} parent=39 // pred_check_branch
          %274 = sbr.rel (%p272) target = $region48
        $region47: #{tpu_custom_call.1} parent=39 // pred_region
          %276 = dma.done [#allocation6], 16
        $region48: #{tpu_custom_call.1} parent=39 // pred_fallthru
          _
        // Predicated region
        $region49: #{tpu_custom_call.1} parent=39 // pred_check
          %p277 = pneg %p102
        $region50: #{tpu_custom_call.1} parent=39 // pred_check_branch
          %279 = sbr.rel (%p277) target = $region52
        $region51: #{tpu_custom_call.1} parent=39 // pred_region
          %281 = dma.done [#allocation7], 16
        $region52: #{tpu_custom_call.1} parent=39 // pred_fallthru
          _
        // Predicated region
        $region53: #{tpu_custom_call.1} parent=39 // pred_check
          %p282 = pneg %p123
        $region54: #{tpu_custom_call.1} parent=39 // pred_check_branch
          %284 = sbr.rel (%p282) target = $region56
        $region55: #{tpu_custom_call.1} parent=39 // pred_region
          %286 = dma.done [#allocation11], 16
        $region56: #{tpu_custom_call.1} parent=39 // pred_fallthru
          _
        // Predicated region
        $region57: #{tpu_custom_call.1} parent=39 // pred_check
          %p287 = pneg %p144
        $region58: #{tpu_custom_call.1} parent=39 // pred_check_branch
          %289 = sbr.rel (%p287) target = $region60
        $region59: #{tpu_custom_call.1} parent=39 // pred_region
          %291 = dma.done [#allocation11], 16
        $region60: #{tpu_custom_call.1} parent=39 // pred_fallthru
          _
        %292 = sfence
        %s293 = sand.u32 %s47, 1
        %s294 = scalar_lea.sflag [#allocation4], %s293
        %s295 = sand.u32 %s47, 1
        %s296 = smul.addr %s295, 48
        %s297 = scalar_lea.vmem [#allocation3], %s296
        %p298 = pneg %p60
        %p299 = pneg %p57
        %p300 = pneg %p81
        %p301 = pneg %p78
        %p302 = pneg %p102
        %p303 = pneg %p99
        %p304 = pneg %p123
        %p305 = pneg %p120
        %p306 = pneg %p144
        %p307 = pneg %p141
        %p308 = pneg %p172
        %p309 = pneg %p169
        %s310 = sand.u32 %s159, 1
        %s311 = scalar_lea.sflag [#allocation5], %s310
        %s312 = sand.u32 %s159, 1
        %s313 = smul.addr %s312, 48
        %s314 = scalar_lea.vmem [#allocation13], %s313
        %s315 = smul.u32 2, %s30
        %s316 = smul.u32 2, %s30
        %v317 = vld [vmem:[%s266] sm:$0x3f]
        %v318 = vld [vmem:[%s266 + $0x8] sm:$0x3f]
        %v321 = vrot.slane %v317, 6
        %v322 = vrot.slane %v318, 6
        %325 = vst [vmem:[#allocation2] sm:$0xfc] %v321
        %326 = vst [vmem:[#allocation2 + $0x8] sm:$0xfc] %v322
        %327 = vst [vmem:[#allocation2] sm:$0x3] 0.0
        %328 = vst [vmem:[#allocation2 + $0x8] sm:$0x3] 0.0
        %v329 = vld [vmem:[%s266] sm:$0x7f]
        %v330 = vld [vmem:[%s266 + $0x8] sm:$0x7f]
        %v333 = vrot.slane %v329, 7
        %v334 = vrot.slane %v330, 7
        %s337 = scalar_lea.vmem [#allocation2], 16
        %338 = vst [vmem:[%s337] sm:$0xfe] %v333
        %339 = vst [vmem:[%s337 + $0x8] sm:$0xfe] %v334
        %v340 = vlaneseq
        %vm341 = vcmp.ge.s32.totalorder %v340, 0
        %vm342 = vcmp.lt.s32.totalorder %v340, 256
        %vm343 = vmand %vm341, %vm342
        %344 = vst.msk [vmem:[%s337] ss:$8 sm:$0x3] %vm343, 0.0
        %345 = vst.msk [vmem:[%s337] ss:$8 sm:$0x0] %vm343, 0.0
        %v346 = vld [vmem:[%s266] sm:$0xfe]
        %v347 = vld [vmem:[%s266 + $0x8] sm:$0xfe]
        %v350 = vrot.slane %v346, 1
        %v351 = vrot.slane %v347, 1
        %s354 = scalar_lea.vmem [#allocation2], 32
        %355 = vst [vmem:[%s354] sm:$0x7f] %v350
        %356 = vst [vmem:[%s354 + $0x8] sm:$0x7f] %v351
        %s357 = scalar_lea.vmem %s354, 7 [#allocation2]
        %358 = vst.msk [vmem:[%s357] ss:$8 sm:$0x3] %vm343, 0.0
        %359 = vst.msk [vmem:[%s357] ss:$8 sm:$0x0] %vm343, 0.0
        %v360 = vld [vmem:[%s266] sm:$0xfc]
        %v361 = vld [vmem:[%s266 + $0x8] sm:$0xfc]
        %v364 = vrot.slane %v360, 2
        %v365 = vrot.slane %v361, 2
        %s368 = scalar_lea.vmem [#allocation2], 48
        %369 = vst [vmem:[%s368] sm:$0x3f] %v364
        %370 = vst [vmem:[%s368 + $0x8] sm:$0x3f] %v365
        %371 = vst [vmem:[%s368] sm:$0xc0] 0.0
        %372 = vst [vmem:[%s368 + $0x8] sm:$0xc0] 0.0
        %s373 = scalar_lea.vmem %s266, 16 [#allocation3]
        %v374 = vld [vmem:[%s373] sm:$0x3f]
        %v375 = vld [vmem:[%s373 + $0x8] sm:$0x3f]
        %v378 = vrot.slane %v374, 6
        %v379 = vrot.slane %v375, 6
        %s382 = scalar_lea.vmem [#allocation2], 64
        %383 = vst [vmem:[%s382] sm:$0xfc] %v378
        %384 = vst [vmem:[%s382 + $0x8] sm:$0xfc] %v379
        %385 = vst [vmem:[%s382] sm:$0x3] 0.0
        %386 = vst [vmem:[%s382 + $0x8] sm:$0x3] 0.0
        %v387 = vld [vmem:[%s373] sm:$0x7f]
        %v388 = vld [vmem:[%s373 + $0x8] sm:$0x7f]
        %v391 = vrot.slane %v387, 7
        %v392 = vrot.slane %v388, 7
        %s395 = scalar_lea.vmem [#allocation2], 80
        %396 = vst [vmem:[%s395] sm:$0xfe] %v391
        %397 = vst [vmem:[%s395 + $0x8] sm:$0xfe] %v392
        %398 = vst.msk [vmem:[%s395] ss:$8 sm:$0x3] %vm343, 0.0
        %399 = vst.msk [vmem:[%s395] ss:$8 sm:$0x0] %vm343, 0.0
        %v400 = vld [vmem:[%s373] sm:$0xfe]
        %v401 = vld [vmem:[%s373 + $0x8] sm:$0xfe]
        %v404 = vrot.slane %v400, 1
        %v405 = vrot.slane %v401, 1
        %s408 = scalar_lea.vmem [#allocation2], 96
        %409 = vst [vmem:[%s408] sm:$0x7f] %v404
        %410 = vst [vmem:[%s408 + $0x8] sm:$0x7f] %v405
        %s411 = scalar_lea.vmem %s408, 7 [#allocation2]
        %412 = vst.msk [vmem:[%s411] ss:$8 sm:$0x3] %vm343, 0.0
        %413 = vst.msk [vmem:[%s411] ss:$8 sm:$0x0] %vm343, 0.0
        %v414 = vld [vmem:[%s373] sm:$0xfc]
        %v415 = vld [vmem:[%s373 + $0x8] sm:$0xfc]
        %v418 = vrot.slane %v414, 2
        %v419 = vrot.slane %v415, 2
        %s422 = scalar_lea.vmem [#allocation2], 112
        %423 = vst [vmem:[%s422] sm:$0x3f] %v418
        %424 = vst [vmem:[%s422 + $0x8] sm:$0x3f] %v419
        %425 = vst [vmem:[%s422] sm:$0xc0] 0.0
        %426 = vst [vmem:[%s422 + $0x8] sm:$0xc0] 0.0
        %s427 = scalar_lea.vmem %s266, 32 [#allocation3]
        %v428 = vld [vmem:[%s427] sm:$0x3f]
        %v429 = vld [vmem:[%s427 + $0x8] sm:$0x3f]
        %v432 = vrot.slane %v428, 6
        %v433 = vrot.slane %v429, 6
        %s436 = scalar_lea.vmem [#allocation2], 128
        %437 = vst [vmem:[%s436] sm:$0xfc] %v432
        %438 = vst [vmem:[%s436 + $0x8] sm:$0xfc] %v433
        %439 = vst [vmem:[%s436] sm:$0x3] 0.0
        %440 = vst [vmem:[%s436 + $0x8] sm:$0x3] 0.0
        %v441 = vld [vmem:[%s427] sm:$0x7f]
        %v442 = vld [vmem:[%s427 + $0x8] sm:$0x7f]
        %v445 = vrot.slane %v441, 7
        %v446 = vrot.slane %v442, 7
        %s449 = scalar_lea.vmem [#allocation2], 144
        %450 = vst [vmem:[%s449] sm:$0xfe] %v445
        %451 = vst [vmem:[%s449 + $0x8] sm:$0xfe] %v446
        %452 = vst.msk [vmem:[%s449] ss:$8 sm:$0x3] %vm343, 0.0
        %453 = vst.msk [vmem:[%s449] ss:$8 sm:$0x0] %vm343, 0.0
        %v454 = vld [vmem:[%s427] sm:$0xfe]
        %v455 = vld [vmem:[%s427 + $0x8] sm:$0xfe]
        %v458 = vrot.slane %v454, 1
        %v459 = vrot.slane %v455, 1
        %s462 = scalar_lea.vmem [#allocation2], 160
        %463 = vst [vmem:[%s462] sm:$0x7f] %v458
        %464 = vst [vmem:[%s462 + $0x8] sm:$0x7f] %v459
        %s465 = scalar_lea.vmem %s462, 7 [#allocation2]
        %466 = vst.msk [vmem:[%s465] ss:$8 sm:$0x3] %vm343, 0.0
        %467 = vst.msk [vmem:[%s465] ss:$8 sm:$0x0] %vm343, 0.0
        %v468 = vld [vmem:[%s427] sm:$0xfc]
        %v469 = vld [vmem:[%s427 + $0x8] sm:$0xfc]
        %v472 = vrot.slane %v468, 2
        %v473 = vrot.slane %v469, 2
        %s476 = scalar_lea.vmem [#allocation2], 176
        %477 = vst [vmem:[%s476] sm:$0x3f] %v472
        %478 = vst [vmem:[%s476 + $0x8] sm:$0x3f] %v473
        %479 = vst [vmem:[%s476] sm:$0xc0] 0.0
        %480 = vst [vmem:[%s476 + $0x8] sm:$0xc0] 0.0
        %v481 = vld [vmem:[#allocation2] sm:$0xff]
        %v482 = vld [vmem:[#allocation2 + $0x8] sm:$0xff]
        %s483 = sld [smem:[#allocation8 + $0x1b]]
        %v484 = vstv %s483
        %v485 = vmul.f32 %v484, %v481
        %v486 = vmul.f32 %v484, %v482
        %s487 = sld [smem:[#allocation8 + $0x2a]]
        %v488 = vstv %s487
        %v489 = vmul.f32 %v488, %v481
        %v490 = vmul.f32 %v488, %v482
        %s491 = sld [smem:[#allocation8 + $0x39]]
        %v492 = vstv %s491
        %v493 = vmul.f32 %v492, %v481
        %v494 = vmul.f32 %v492, %v482
        %v495 = vld [vmem:[%s337] sm:$0xff]
        %v496 = vld [vmem:[%s337 + $0x8] sm:$0xff]
        %s497 = sld [smem:[#allocation8 + $0x1c]]
        %v498 = vstv %s497
        %v499 = vmul.f32 %v498, %v495
        %v500 = vmul.f32 %v498, %v496
        %v501 = vadd.f32 %v485, %v499
        %v502 = vadd.f32 %v486, %v500
        %s503 = sld [smem:[#allocation8 + $0x2b]]
        %v504 = vstv %s503
        %v505 = vmul.f32 %v504, %v495
        %v506 = vmul.f32 %v504, %v496
        %v507 = vadd.f32 %v489, %v505
        %v508 = vadd.f32 %v490, %v506
        %s509 = sld [smem:[#allocation8 + $0x3a]]
        %v510 = vstv %s509
        %v511 = vmul.f32 %v510, %v495
        %v512 = vmul.f32 %v510, %v496
        %v513 = vadd.f32 %v493, %v511
        %v514 = vadd.f32 %v494, %v512
        %s515 = sld [smem:[#allocation8]]
        %v516 = vstv %s515
        %v517 = vmul.f32 %v516, %v495
        %v518 = vmul.f32 %v516, %v496
        %s519 = sld [smem:[#allocation8 + $0x9]]
        %v520 = vstv %s519
        %v521 = vmul.f32 %v520, %v495
        %v522 = vmul.f32 %v520, %v496
        %s523 = sld [smem:[#allocation8 + $0x12]]
        %v524 = vstv %s523
        %v525 = vmul.f32 %v524, %v495
        %v526 = vmul.f32 %v524, %v496
        %v527 = vld [vmem:[%s266] sm:$0xff]
        %v528 = vld [vmem:[%s266 + $0x8] sm:$0xff]
        %s529 = sld [smem:[#allocation8 + $0x1d]]
        %v530 = vstv %s529
        %v531 = vmul.f32 %v530, %v527
        %v532 = vmul.f32 %v530, %v528
        %v533 = vadd.f32 %v501, %v531
        %v534 = vadd.f32 %v502, %v532
        %s535 = sld [smem:[#allocation8 + $0x2c]]
        %v536 = vstv %s535
        %v537 = vmul.f32 %v536, %v527
        %v538 = vmul.f32 %v536, %v528
        %v539 = vadd.f32 %v507, %v537
        %v540 = vadd.f32 %v508, %v538
        %s541 = sld [smem:[#allocation8 + $0x3b]]
        %v542 = vstv %s541
        %v543 = vmul.f32 %v542, %v527
        %v544 = vmul.f32 %v542, %v528
        %v545 = vadd.f32 %v513, %v543
        %v546 = vadd.f32 %v514, %v544
        %s547 = sld [smem:[#allocation8 + $0x1]]
        %v548 = vstv %s547
        %v549 = vmul.f32 %v548, %v527
        %v550 = vmul.f32 %v548, %v528
        %v551 = vadd.f32 %v517, %v549
        %v552 = vadd.f32 %v518, %v550
        %s553 = sld [smem:[#allocation8 + $0xa]]
        %v554 = vstv %s553
        %v555 = vmul.f32 %v554, %v527
        %v556 = vmul.f32 %v554, %v528
        %v557 = vadd.f32 %v521, %v555
        %v558 = vadd.f32 %v522, %v556
        %s559 = sld [smem:[#allocation8 + $0x13]]
        %v560 = vstv %s559
        %v561 = vmul.f32 %v560, %v527
        %v562 = vmul.f32 %v560, %v528
        %v563 = vadd.f32 %v525, %v561
        %v564 = vadd.f32 %v526, %v562
        %v565 = vld [vmem:[%s354] sm:$0xff]
        %v566 = vld [vmem:[%s354 + $0x8] sm:$0xff]
        %s567 = sld [smem:[#allocation8 + $0x1e]]
        %v568 = vstv %s567
        %v569 = vmul.f32 %v568, %v565
        %v570 = vmul.f32 %v568, %v566
        %v571 = vadd.f32 %v533, %v569
        %v572 = vadd.f32 %v534, %v570
        %s573 = sld [smem:[#allocation8 + $0x2d]]
        %v574 = vstv %s573
        %v575 = vmul.f32 %v574, %v565
        %v576 = vmul.f32 %v574, %v566
        %v577 = vadd.f32 %v539, %v575
        %v578 = vadd.f32 %v540, %v576
        %s579 = sld [smem:[#allocation8 + $0x3c]]
        %v580 = vstv %s579
        %v581 = vmul.f32 %v580, %v565
        %v582 = vmul.f32 %v580, %v566
        %v583 = vadd.f32 %v545, %v581
        %v584 = vadd.f32 %v546, %v582
        %s585 = sld [smem:[#allocation8 + $0x2]]
        %v586 = vstv %s585
        %v587 = vmul.f32 %v586, %v565
        %v588 = vmul.f32 %v586, %v566
        %v589 = vadd.f32 %v551, %v587
        %v590 = vadd.f32 %v552, %v588
        %s591 = sld [smem:[#allocation8 + $0xb]]
        %v592 = vstv %s591
        %v593 = vmul.f32 %v592, %v565
        %v594 = vmul.f32 %v592, %v566
        %v595 = vadd.f32 %v557, %v593
        %v596 = vadd.f32 %v558, %v594
        %s597 = sld [smem:[#allocation8 + $0x14]]
        %v598 = vstv %s597
        %v599 = vmul.f32 %v598, %v565
        %v600 = vmul.f32 %v598, %v566
        %v601 = vadd.f32 %v563, %v599
        %v602 = vadd.f32 %v564, %v600
        %v603 = vld [vmem:[%s368] sm:$0xff]
        %v604 = vld [vmem:[%s368 + $0x8] sm:$0xff]
        %s605 = sld [smem:[#allocation8 + $0x1f]]
        %v606 = vstv %s605
        %v607 = vmul.f32 %v606, %v603
        %v608 = vmul.f32 %v606, %v604
        %v609 = vadd.f32 %v571, %v607
        %v610 = vadd.f32 %v572, %v608
        %s611 = sld [smem:[#allocation8 + $0x2e]]
        %v612 = vstv %s611
        %v613 = vmul.f32 %v612, %v603
        %v614 = vmul.f32 %v612, %v604
        %v615 = vadd.f32 %v577, %v613
        %v616 = vadd.f32 %v578, %v614
        %s617 = sld [smem:[#allocation8 + $0x3d]]
        %v618 = vstv %s617
        %v619 = vmul.f32 %v618, %v603
        %v620 = vmul.f32 %v618, %v604
        %v621 = vadd.f32 %v583, %v619
        %v622 = vadd.f32 %v584, %v620
        %v623 = vld [vmem:[%s382] sm:$0xff]
        %v624 = vld [vmem:[%s382 + $0x8] sm:$0xff]
        %s625 = sld [smem:[#allocation8 + $0x20]]
        %v626 = vstv %s625
        %v627 = vmul.f32 %v626, %v623
        %v628 = vmul.f32 %v626, %v624
        %v629 = vadd.f32 %v609, %v627
        %v630 = vadd.f32 %v610, %v628
        %s631 = sld [smem:[#allocation8 + $0x2f]]
        %v632 = vstv %s631
        %v633 = vmul.f32 %v632, %v623
        %v634 = vmul.f32 %v632, %v624
        %v635 = vadd.f32 %v615, %v633
        %v636 = vadd.f32 %v616, %v634
        %s637 = sld [smem:[#allocation8 + $0x3e]]
        %v638 = vstv %s637
        %v639 = vmul.f32 %v638, %v623
        %v640 = vmul.f32 %v638, %v624
        %v641 = vadd.f32 %v621, %v639
        %v642 = vadd.f32 %v622, %v640
        %v643 = vld [vmem:[%s395] sm:$0xff]
        %v644 = vld [vmem:[%s395 + $0x8] sm:$0xff]
        %s645 = sld [smem:[#allocation8 + $0x21]]
        %v646 = vstv %s645
        %v647 = vmul.f32 %v646, %v643
        %v648 = vmul.f32 %v646, %v644
        %v649 = vadd.f32 %v629, %v647
        %v650 = vadd.f32 %v630, %v648
        %s651 = sld [smem:[#allocation8 + $0x30]]
        %v652 = vstv %s651
        %v653 = vmul.f32 %v652, %v643
        %v654 = vmul.f32 %v652, %v644
        %v655 = vadd.f32 %v635, %v653
        %v656 = vadd.f32 %v636, %v654
        %s657 = sld [smem:[#allocation8 + $0x3f]]
        %v658 = vstv %s657
        %v659 = vmul.f32 %v658, %v643
        %v660 = vmul.f32 %v658, %v644
        %v661 = vadd.f32 %v641, %v659
        %v662 = vadd.f32 %v642, %v660
        %s663 = sld [smem:[#allocation8 + $0x3]]
        %v664 = vstv %s663
        %v665 = vmul.f32 %v664, %v643
        %v666 = vmul.f32 %v664, %v644
        %v667 = vadd.f32 %v589, %v665
        %v668 = vadd.f32 %v590, %v666
        %s669 = sld [smem:[#allocation8 + $0xc]]
        %v670 = vstv %s669
        %v671 = vmul.f32 %v670, %v643
        %v672 = vmul.f32 %v670, %v644
        %v673 = vadd.f32 %v595, %v671
        %v674 = vadd.f32 %v596, %v672
        %s675 = sld [smem:[#allocation8 + $0x15]]
        %v676 = vstv %s675
        %v677 = vmul.f32 %v676, %v643
        %v678 = vmul.f32 %v676, %v644
        %v679 = vadd.f32 %v601, %v677
        %v680 = vadd.f32 %v602, %v678
        %v681 = vld [vmem:[%s373] sm:$0xff]
        %v682 = vld [vmem:[%s373 + $0x8] sm:$0xff]
        %s683 = sld [smem:[#allocation8 + $0x22]]
        %v684 = vstv %s683
        %v685 = vmul.f32 %v684, %v681
        %v686 = vmul.f32 %v684, %v682
        %v687 = vadd.f32 %v649, %v685
        %v688 = vadd.f32 %v650, %v686
        %s689 = sld [smem:[#allocation8 + $0x31]]
        %v690 = vstv %s689
        %v691 = vmul.f32 %v690, %v681
        %v692 = vmul.f32 %v690, %v682
        %v693 = vadd.f32 %v655, %v691
        %v694 = vadd.f32 %v656, %v692
        %s695 = sld [smem:[#allocation8 + $0x40]]
        %v696 = vstv %s695
        %v697 = vmul.f32 %v696, %v681
        %v698 = vmul.f32 %v696, %v682
        %v699 = vadd.f32 %v661, %v697
        %v700 = vadd.f32 %v662, %v698
        %s701 = sld [smem:[#allocation8 + $0x4]]
        %v702 = vstv %s701
        %v703 = vmul.f32 %v702, %v681
        %v704 = vmul.f32 %v702, %v682
        %v705 = vadd.f32 %v667, %v703
        %v706 = vadd.f32 %v668, %v704
        %s707 = sld [smem:[#allocation8 + $0xd]]
        %v708 = vstv %s707
        %v709 = vmul.f32 %v708, %v681
        %v710 = vmul.f32 %v708, %v682
        %v711 = vadd.f32 %v673, %v709
        %v712 = vadd.f32 %v674, %v710
        %s713 = sld [smem:[#allocation8 + $0x16]]
        %v714 = vstv %s713
        %v715 = vmul.f32 %v714, %v681
        %v716 = vmul.f32 %v714, %v682
        %v717 = vadd.f32 %v679, %v715
        %v718 = vadd.f32 %v680, %v716
        %v719 = vld [vmem:[%s408] sm:$0xff]
        %v720 = vld [vmem:[%s408 + $0x8] sm:$0xff]
        %s721 = sld [smem:[#allocation8 + $0x23]]
        %v722 = vstv %s721
        %v723 = vmul.f32 %v722, %v719
        %v724 = vmul.f32 %v722, %v720
        %v725 = vadd.f32 %v687, %v723
        %v726 = vadd.f32 %v688, %v724
        %s727 = sld [smem:[#allocation8 + $0x32]]
        %v728 = vstv %s727
        %v729 = vmul.f32 %v728, %v719
        %v730 = vmul.f32 %v728, %v720
        %v731 = vadd.f32 %v693, %v729
        %v732 = vadd.f32 %v694, %v730
        %s733 = sld [smem:[#allocation8 + $0x41]]
        %v734 = vstv %s733
        %v735 = vmul.f32 %v734, %v719
        %v736 = vmul.f32 %v734, %v720
        %v737 = vadd.f32 %v699, %v735
        %v738 = vadd.f32 %v700, %v736
        %s739 = sld [smem:[#allocation8 + $0x5]]
        %v740 = vstv %s739
        %v741 = vmul.f32 %v740, %v719
        %v742 = vmul.f32 %v740, %v720
        %v743 = vadd.f32 %v705, %v741
        %v744 = vadd.f32 %v706, %v742
        %s745 = sld [smem:[#allocation8 + $0xe]]
        %v746 = vstv %s745
        %v747 = vmul.f32 %v746, %v719
        %v748 = vmul.f32 %v746, %v720
        %v749 = vadd.f32 %v711, %v747
        %v750 = vadd.f32 %v712, %v748
        %s751 = sld [smem:[#allocation8 + $0x17]]
        %v752 = vstv %s751
        %v753 = vmul.f32 %v752, %v719
        %v754 = vmul.f32 %v752, %v720
        %v755 = vadd.f32 %v717, %v753
        %v756 = vadd.f32 %v718, %v754
        %v757 = vld [vmem:[%s422] sm:$0xff]
        %v758 = vld [vmem:[%s422 + $0x8] sm:$0xff]
        %s759 = sld [smem:[#allocation8 + $0x24]]
        %v760 = vstv %s759
        %v761 = vmul.f32 %v760, %v757
        %v762 = vmul.f32 %v760, %v758
        %v763 = vadd.f32 %v725, %v761
        %v764 = vadd.f32 %v726, %v762
        %s765 = sld [smem:[#allocation8 + $0x33]]
        %v766 = vstv %s765
        %v767 = vmul.f32 %v766, %v757
        %v768 = vmul.f32 %v766, %v758
        %v769 = vadd.f32 %v731, %v767
        %v770 = vadd.f32 %v732, %v768
        %s771 = sld [smem:[#allocation8 + $0x42]]
        %v772 = vstv %s771
        %v773 = vmul.f32 %v772, %v757
        %v774 = vmul.f32 %v772, %v758
        %v775 = vadd.f32 %v737, %v773
        %v776 = vadd.f32 %v738, %v774
        %v777 = vld [vmem:[%s436] sm:$0xff]
        %v778 = vld [vmem:[%s436 + $0x8] sm:$0xff]
        %s779 = sld [smem:[#allocation8 + $0x25]]
        %v780 = vstv %s779
        %v781 = vmul.f32 %v780, %v777
        %v782 = vmul.f32 %v780, %v778
        %v783 = vadd.f32 %v763, %v781
        %v784 = vadd.f32 %v764, %v782
        %s785 = sld [smem:[#allocation8 + $0x34]]
        %v786 = vstv %s785
        %v787 = vmul.f32 %v786, %v777
        %v788 = vmul.f32 %v786, %v778
        %v789 = vadd.f32 %v769, %v787
        %v790 = vadd.f32 %v770, %v788
        %s791 = sld [smem:[#allocation8 + $0x43]]
        %v792 = vstv %s791
        %v793 = vmul.f32 %v792, %v777
        %v794 = vmul.f32 %v792, %v778
        %v795 = vadd.f32 %v775, %v793
        %v796 = vadd.f32 %v776, %v794
        %v797 = vld [vmem:[%s449] sm:$0xff]
        %v798 = vld [vmem:[%s449 + $0x8] sm:$0xff]
        %s799 = sld [smem:[#allocation8 + $0x26]]
        %v800 = vstv %s799
        %v801 = vmul.f32 %v800, %v797
        %v802 = vmul.f32 %v800, %v798
        %v803 = vadd.f32 %v783, %v801
        %v804 = vadd.f32 %v784, %v802
        %s805 = sld [smem:[#allocation8 + $0x35]]
        %v806 = vstv %s805
        %v807 = vmul.f32 %v806, %v797
        %v808 = vmul.f32 %v806, %v798
        %v809 = vadd.f32 %v789, %v807
        %v810 = vadd.f32 %v790, %v808
        %s811 = sld [smem:[#allocation8 + $0x44]]
        %v812 = vstv %s811
        %v813 = vmul.f32 %v812, %v797
        %v814 = vmul.f32 %v812, %v798
        %v815 = vadd.f32 %v795, %v813
        %v816 = vadd.f32 %v796, %v814
        %s817 = sld [smem:[#allocation8 + $0x6]]
        %v818 = vstv %s817
        %v819 = vmul.f32 %v818, %v797
        %v820 = vmul.f32 %v818, %v798
        %v821 = vadd.f32 %v743, %v819
        %v822 = vadd.f32 %v744, %v820
        %s823 = sld [smem:[#allocation8 + $0xf]]
        %v824 = vstv %s823
        %v825 = vmul.f32 %v824, %v797
        %v826 = vmul.f32 %v824, %v798
        %v827 = vadd.f32 %v749, %v825
        %v828 = vadd.f32 %v750, %v826
        %s829 = sld [smem:[#allocation8 + $0x18]]
        %v830 = vstv %s829
        %v831 = vmul.f32 %v830, %v797
        %v832 = vmul.f32 %v830, %v798
        %v833 = vadd.f32 %v755, %v831
        %v834 = vadd.f32 %v756, %v832
        %v835 = vld [vmem:[%s427] sm:$0xff]
        %v836 = vld [vmem:[%s427 + $0x8] sm:$0xff]
        %s837 = sld [smem:[#allocation8 + $0x27]]
        %v838 = vstv %s837
        %v839 = vmul.f32 %v838, %v835
        %v840 = vmul.f32 %v838, %v836
        %v841 = vadd.f32 %v803, %v839
        %v842 = vadd.f32 %v804, %v840
        %s843 = sld [smem:[#allocation8 + $0x36]]
        %v844 = vstv %s843
        %v845 = vmul.f32 %v844, %v835
        %v846 = vmul.f32 %v844, %v836
        %v847 = vadd.f32 %v809, %v845
        %v848 = vadd.f32 %v810, %v846
        %s849 = sld [smem:[#allocation8 + $0x45]]
        %v850 = vstv %s849
        %v851 = vmul.f32 %v850, %v835
        %v852 = vmul.f32 %v850, %v836
        %v853 = vadd.f32 %v815, %v851
        %v854 = vadd.f32 %v816, %v852
        %s855 = sld [smem:[#allocation8 + $0x7]]
        %v856 = vstv %s855
        %v857 = vmul.f32 %v856, %v835
        %v858 = vmul.f32 %v856, %v836
        %v859 = vadd.f32 %v821, %v857
        %v860 = vadd.f32 %v822, %v858
        %s861 = sld [smem:[#allocation8 + $0x10]]
        %v862 = vstv %s861
        %v863 = vmul.f32 %v862, %v835
        %v864 = vmul.f32 %v862, %v836
        %v865 = vadd.f32 %v827, %v863
        %v866 = vadd.f32 %v828, %v864
        %s867 = sld [smem:[#allocation8 + $0x19]]
        %v868 = vstv %s867
        %v869 = vmul.f32 %v868, %v835
        %v870 = vmul.f32 %v868, %v836
        %v871 = vadd.f32 %v833, %v869
        %v872 = vadd.f32 %v834, %v870
        %v873 = vld [vmem:[%s462] sm:$0xff]
        %v874 = vld [vmem:[%s462 + $0x8] sm:$0xff]
        %s875 = sld [smem:[#allocation8 + $0x28]]
        %v876 = vstv %s875
        %v877 = vmul.f32 %v876, %v873
        %v878 = vmul.f32 %v876, %v874
        %v879 = vadd.f32 %v841, %v877
        %v880 = vadd.f32 %v842, %v878
        %s881 = sld [smem:[#allocation8 + $0x37]]
        %v882 = vstv %s881
        %v883 = vmul.f32 %v882, %v873
        %v884 = vmul.f32 %v882, %v874
        %v885 = vadd.f32 %v847, %v883
        %v886 = vadd.f32 %v848, %v884
        %s887 = sld [smem:[#allocation8 + $0x46]]
        %v888 = vstv %s887
        %v889 = vmul.f32 %v888, %v873
        %v890 = vmul.f32 %v888, %v874
        %v891 = vadd.f32 %v853, %v889
        %v892 = vadd.f32 %v854, %v890
        %s893 = sld [smem:[#allocation8 + $0x8]]
        %v894 = vstv %s893
        %v895 = vmul.f32 %v894, %v873
        %v896 = vmul.f32 %v894, %v874
        %v897 = vadd.f32 %v859, %v895
        %v898 = vadd.f32 %v860, %v896
        %s899 = sld [smem:[#allocation8 + $0x11]]
        %v900 = vstv %s899
        %v901 = vmul.f32 %v900, %v873
        %v902 = vmul.f32 %v900, %v874
        %v903 = vadd.f32 %v865, %v901
        %v904 = vadd.f32 %v866, %v902
        %s905 = sld [smem:[#allocation8 + $0x1a]]
        %v906 = vstv %s905
        %v907 = vmul.f32 %v906, %v873
        %v908 = vmul.f32 %v906, %v874
        %v909 = vadd.f32 %v871, %v907
        %v910 = vadd.f32 %v872, %v908
        %v911 = vld [vmem:[%s476] sm:$0xff]
        %v912 = vld [vmem:[%s476 + $0x8] sm:$0xff]
        %s913 = sld [smem:[#allocation8 + $0x29]]
        %v914 = vstv %s913
        %v915 = vmul.f32 %v914, %v911
        %v916 = vmul.f32 %v914, %v912
        %v917 = vadd.f32 %v879, %v915
        %v918 = vadd.f32 %v880, %v916
        %s919 = sld [smem:[#allocation8 + $0x38]]
        %v920 = vstv %s919
        %v921 = vmul.f32 %v920, %v911
        %v922 = vmul.f32 %v920, %v912
        %v923 = vadd.f32 %v885, %v921
        %v924 = vadd.f32 %v886, %v922
        %s925 = sld [smem:[#allocation8 + $0x47]]
        %v926 = vstv %s925
        %v927 = vmul.f32 %v926, %v911
        %v928 = vmul.f32 %v926, %v912
        %v929 = vadd.f32 %v891, %v927
        %v930 = vadd.f32 %v892, %v928
        %s931 = sld [smem:[#allocation9]]
        %v932 = vstv %s931
        %v933 = vadd.f32 %v897, %v932
        %v934 = vadd.f32 %v898, %v932
        %v935 = vmax.f32 %v933, 0.0
        %v936 = vmax.f32 %v934, 0.0
        %s937 = sld [smem:[#allocation10]]
        %v938 = vstv %s937
        %v939 = vmul.f32 %v938, %v935
        %v940 = vmul.f32 %v938, %v936
        %s941 = sld [smem:[#allocation10 + $0x6]]
        %v942 = vstv %s941
        %v943 = vmul.f32 %v942, %v935
        %v944 = vmul.f32 %v942, %v936
        %s945 = sld [smem:[#allocation10 + $0xc]]
        %v946 = vstv %s945
        %v947 = vmul.f32 %v946, %v935
        %v948 = vmul.f32 %v946, %v936
        %s949 = sld [smem:[#allocation9 + $0x1]]
        %v950 = vstv %s949
        %v951 = vadd.f32 %v903, %v950
        %v952 = vadd.f32 %v904, %v950
        %v953 = vmax.f32 %v951, 0.0
        %v954 = vmax.f32 %v952, 0.0
        %s955 = sld [smem:[#allocation10 + $0x1]]
        %v956 = vstv %s955
        %v957 = vmul.f32 %v956, %v953
        %v958 = vmul.f32 %v956, %v954
        %v959 = vadd.f32 %v939, %v957
        %v960 = vadd.f32 %v940, %v958
        %s961 = sld [smem:[#allocation10 + $0x7]]
        %v962 = vstv %s961
        %v963 = vmul.f32 %v962, %v953
        %v964 = vmul.f32 %v962, %v954
        %v965 = vadd.f32 %v943, %v963
        %v966 = vadd.f32 %v944, %v964
        %s967 = sld [smem:[#allocation10 + $0xd]]
        %v968 = vstv %s967
        %v969 = vmul.f32 %v968, %v953
        %v970 = vmul.f32 %v968, %v954
        %v971 = vadd.f32 %v947, %v969
        %v972 = vadd.f32 %v948, %v970
        %s973 = sld [smem:[#allocation9 + $0x2]]
        %v974 = vstv %s973
        %v975 = vadd.f32 %v909, %v974
        %v976 = vadd.f32 %v910, %v974
        %v977 = vmax.f32 %v975, 0.0
        %v978 = vmax.f32 %v976, 0.0
        %s979 = sld [smem:[#allocation10 + $0x2]]
        %v980 = vstv %s979
        %v981 = vmul.f32 %v980, %v977
        %v982 = vmul.f32 %v980, %v978
        %v983 = vadd.f32 %v959, %v981
        %v984 = vadd.f32 %v960, %v982
        %s985 = sld [smem:[#allocation10 + $0x8]]
        %v986 = vstv %s985
        %v987 = vmul.f32 %v986, %v977
        %v988 = vmul.f32 %v986, %v978
        %v989 = vadd.f32 %v965, %v987
        %v990 = vadd.f32 %v966, %v988
        %s991 = sld [smem:[#allocation10 + $0xe]]
        %v992 = vstv %s991
        %v993 = vmul.f32 %v992, %v977
        %v994 = vmul.f32 %v992, %v978
        %v995 = vadd.f32 %v971, %v993
        %v996 = vadd.f32 %v972, %v994
        %s997 = sld [smem:[#allocation9 + $0x3]]
        %v998 = vstv %s997
        %v999 = vadd.f32 %v917, %v998
        %v1000 = vadd.f32 %v918, %v998
        %v1001 = vmax.f32 %v999, 0.0
        %v1002 = vmax.f32 %v1000, 0.0
        %s1003 = sld [smem:[#allocation10 + $0x3]]
        %v1004 = vstv %s1003
        %v1005 = vmul.f32 %v1004, %v1001
        %v1006 = vmul.f32 %v1004, %v1002
        %v1007 = vadd.f32 %v983, %v1005
        %v1008 = vadd.f32 %v984, %v1006
        %s1009 = sld [smem:[#allocation10 + $0x9]]
        %v1010 = vstv %s1009
        %v1011 = vmul.f32 %v1010, %v1001
        %v1012 = vmul.f32 %v1010, %v1002
        %v1013 = vadd.f32 %v989, %v1011
        %v1014 = vadd.f32 %v990, %v1012
        %s1015 = sld [smem:[#allocation10 + $0xf]]
        %v1016 = vstv %s1015
        %v1017 = vmul.f32 %v1016, %v1001
        %v1018 = vmul.f32 %v1016, %v1002
        %v1019 = vadd.f32 %v995, %v1017
        %v1020 = vadd.f32 %v996, %v1018
        %s1021 = sld [smem:[#allocation9 + $0x4]]
        %v1022 = vstv %s1021
        %v1023 = vadd.f32 %v923, %v1022
        %v1024 = vadd.f32 %v924, %v1022
        %v1025 = vmax.f32 %v1023, 0.0
        %v1026 = vmax.f32 %v1024, 0.0
        %s1027 = sld [smem:[#allocation10 + $0x4]]
        %v1028 = vstv %s1027
        %v1029 = vmul.f32 %v1028, %v1025
        %v1030 = vmul.f32 %v1028, %v1026
        %v1031 = vadd.f32 %v1007, %v1029
        %v1032 = vadd.f32 %v1008, %v1030
        %s1033 = sld [smem:[#allocation10 + $0xa]]
        %v1034 = vstv %s1033
        %v1035 = vmul.f32 %v1034, %v1025
        %v1036 = vmul.f32 %v1034, %v1026
        %v1037 = vadd.f32 %v1013, %v1035
        %v1038 = vadd.f32 %v1014, %v1036
        %s1039 = sld [smem:[#allocation10 + $0x10]]
        %v1040 = vstv %s1039
        %v1041 = vmul.f32 %v1040, %v1025
        %v1042 = vmul.f32 %v1040, %v1026
        %v1043 = vadd.f32 %v1019, %v1041
        %v1044 = vadd.f32 %v1020, %v1042
        %s1045 = sld [smem:[#allocation9 + $0x5]]
        %v1046 = vstv %s1045
        %v1047 = vadd.f32 %v929, %v1046
        %v1048 = vadd.f32 %v930, %v1046
        %v1049 = vmax.f32 %v1047, 0.0
        %v1050 = vmax.f32 %v1048, 0.0
        %s1051 = sld [smem:[#allocation10 + $0x5]]
        %v1052 = vstv %s1051
        %v1053 = vmul.f32 %v1052, %v1049
        %v1054 = vmul.f32 %v1052, %v1050
        %v1055 = vadd.f32 %v1031, %v1053
        %v1056 = vadd.f32 %v1032, %v1054
        %s1057 = sld [smem:[#allocation10 + $0xb]]
        %v1058 = vstv %s1057
        %v1059 = vmul.f32 %v1058, %v1049
        %v1060 = vmul.f32 %v1058, %v1050
        %v1061 = vadd.f32 %v1037, %v1059
        %v1062 = vadd.f32 %v1038, %v1060
        %s1063 = sld [smem:[#allocation10 + $0x11]]
        %v1064 = vstv %s1063
        %v1065 = vmul.f32 %v1064, %v1049
        %v1066 = vmul.f32 %v1064, %v1050
        %v1067 = vadd.f32 %v1043, %v1065
        %v1068 = vadd.f32 %v1044, %v1066
        %s1069 = sld [smem:[#allocation12]]
        %v1070 = vstv %s1069
        %v1071 = vadd.f32 %v1055, %v1070
        %v1072 = vadd.f32 %v1056, %v1070
        %1073 = vst [vmem:[%s314] sm:$0xff] %v1071
        %1074 = vst [vmem:[%s314 + $0x8] sm:$0xff] %v1072
        %s1075 = sld [smem:[#allocation12 + $0x1]]
        %v1076 = vstv %s1075
        %v1077 = vadd.f32 %v1061, %v1076
        %v1078 = vadd.f32 %v1062, %v1076
        %s1079 = scalar_lea.vmem %s314, 16 [#allocation13]
        %1080 = vst [vmem:[%s1079] sm:$0xff] %v1077
        %1081 = vst [vmem:[%s1079 + $0x8] sm:$0xff] %v1078
        %s1082 = sld [smem:[#allocation12 + $0x2]]
        %v1083 = vstv %s1082
        %v1084 = vadd.f32 %v1067, %v1083
        %v1085 = vadd.f32 %v1068, %v1083
        %s1086 = scalar_lea.vmem %s314, 32 [#allocation13]
        %1087 = vst [vmem:[%s1086] sm:$0xff] %v1084
        %1088 = vst [vmem:[%s1086 + $0x8] sm:$0xff] %v1085
        %s1089 = sand.u32 %s159, 1
        %s1090 = scalar_lea.sflag [#allocation5], %s1089
        %s1091 = sand.u32 %s159, 1
        %s1092 = smul.addr %s1091, 48
        %s1093 = scalar_lea.vmem [#allocation13], %s1092
        // Predicated region
        $region61: #{tpu_custom_call.1} parent=39 // pred_check
          %p1094 = pneg %p169
        $region62: #{tpu_custom_call.1} parent=39 // pred_check_branch
          %1096 = sbr.rel (%p1094) target = $region64
        $region63: #{tpu_custom_call.1} parent=39 // pred_region
          %s1097 = smul.u32 2, %s30
          %1099 = vsyncadd %s1090, 0
          %s1100 = smul.addr %s29, 6
          %s1101 = sadd.s32 %s1097, %s1100
          %s1102 = smul.addr %s1101, 8
          %s1103 = scalar_lea.hbm %s5, %s1102
          %s1104 = sshll.u32 %s1093, 4
          %s1105 = int_to_ptr.vmem [resolvable:$true] %s1104
          %s1106 = sshll.u32 %s1103, 4
          %s1107 = int_to_ptr.hbm [resolvable:$true] %s1106
          %1112 = dma.vmem_to_hbm [thread:$0]  %s1105, 768, %s1107, %s1090, 256, 256, 16
        $region64: #{tpu_custom_call.1} parent=39 // pred_fallthru
          _
      $region40: #{tpu_custom_call.1} parent=5 // pred_fallthru
        _
      %p1113 = scmp.le.s32.totalorder 2, %s20
      // Predicated region
      $region65: #{tpu_custom_call.1} parent=5 // pred_check
        %p1114 = pneg %p1113
      $region66: #{tpu_custom_call.1} parent=5 // pred_check_branch
        %1116 = sbr.rel (%p1114) target = $region68
      $region67: #{tpu_custom_call.1} parent=5 // pred_region
        %s1117 = ssub.s32 %s20, 2
        // Predicated region
        $region69: #{tpu_custom_call.1} parent=67 // pred_check
          %p1118 = pneg %p175
        $region70: #{tpu_custom_call.1} parent=67 // pred_check_branch
          %1120 = sbr.rel (%p1118) target = $region72
        $region71: #{tpu_custom_call.1} parent=67 // pred_region
          %s1121 = sand.u32 %s160, 1
          %s1122 = scalar_lea.sflag [#allocation5], %s1121
          %s1123 = sand.u32 %s160, 1
          %s1124 = smul.addr %s1123, 48
          %s1125 = scalar_lea.vmem [#allocation13], %s1124
          %1127 = dma.done %s1122, 768
        $region72: #{tpu_custom_call.1} parent=67 // pred_fallthru
          _
      $region68: #{tpu_custom_call.1} parent=5 // pred_fallthru
        _
    $region6: #{tpu_custom_call.1} parent=1 // loop_footer
      %s24 = sadd.s32 1, %s20
    $region7: #{tpu_custom_call.1} parent=1 // loop_footer_branch
      %19 = sbr.rel target = $region3
    $region8: #{tpu_custom_call.1} parent=1 // loop_exit
      _
    %1128 = vsyncpa [#allocation4], 1
    %s1129 = scalar_lea.sflag [#allocation4], 1
    %1130 = vsyncpa %s1129, 1
    %1131 = vsyncpa [#allocation5], 1
    %s1132 = scalar_lea.sflag [#allocation5], 1
    %1133 = vsyncpa %s1132, 1
    %1134 = vsyncpa [#allocation6], 1
    %s1135 = scalar_lea.sflag [#allocation6], 1
    %1136 = vsyncpa %s1135, 1
    %1137 = vsyncpa [#allocation7], 1
    %s1138 = scalar_lea.sflag [#allocation7], 1
    %1139 = vsyncpa %s1138, 1
    %1140 = vsyncpa [#allocation11], 1

</llo_original>
